<compile_context>
chip_gen: v7x
topology: tpu7x:2x2x1
jax: 0.10.0
libtpu: 0.0.40
codegen_flags: <defaults>
</compile_context>

<pallas_src>
import jax
import jax.numpy as jnp
import numpy as np
from jax.experimental import pallas as pl
from jax.experimental.pallas import tpu as pltpu


# ----------------------------------------------------------------------------
# The fused Pallas kernel
# ----------------------------------------------------------------------------
def _cnn_fashion_kernel(x_ref, band1_ref, bias1_ref, band2_ref, bias2_ref,
                        wfc1_ref, bfc1_ref, wfc2_ref, bfc2_ref,
                        o_ref, c1_scr, c2_scr):
    tb = x_ref.shape[0]
    f32 = jnp.float32

    # ---- conv1 (5x5, 1->10) + bias + ReLU + fused 2x2/2 max-pool -----------
    # band1[i]: (28, 256).  Column p*128 + wo_e*10 + c holds w1[c,0,i,j] at
    # row 2*wo_e + p + j, so (shifted input rows) @ band1[i] yields the conv
    # outputs for even (lanes 0..127) / odd (lanes 128..255) output columns.
    y1 = jnp.zeros((tb * 24, 256), f32)
    for i in range(5):
        xi = x_ref[:, pl.ds(i, 24), :].reshape(tb * 24, 28)
        y1 = y1 + jnp.dot(xi, band1_ref[i], preferred_element_type=f32)
    y1 = jnp.maximum(y1 + bias1_ref[...], 0.0)
    m1 = jnp.maximum(y1[:, :128], y1[:, 128:])              # pool over W (free)
    c1_scr[...] = m1.reshape(tb, 24, 128)
    x2 = jnp.maximum(c1_scr[:, pl.ds(0, 12, 2), :],         # pool over H
                     c1_scr[:, pl.ds(1, 12, 2), :])         # (tb, 12, 128)

    # ---- conv2 (5x5, 10->12) + bias + ReLU + fused pool ---------------------
    # x2 lanes are (w, cin) pairs (w*10 + cin), lanes 120..127 are zero.
    y2 = jnp.zeros((tb * 8, 256), f32)
    for i in range(5):
        xi = x2[:, i:i + 8, :].reshape(tb * 8, 128)
        y2 = y2 + jnp.dot(xi, band2_ref[i], preferred_element_type=f32)
    y2 = jnp.maximum(y2 + bias2_ref[...], 0.0)
    m2 = jnp.maximum(y2[:, :128], y2[:, 128:])
    c2_scr[...] = m2.reshape(tb, 8, 128)
    x3 = jnp.maximum(c2_scr[:, pl.ds(0, 4, 2), :],
                     c2_scr[:, pl.ds(1, 4, 2), :])          # (tb, 4, 128)

    # ---- fc1 (192 -> 80) + ReLU ---------------------------------------------
    # x3 lanes are (w, c) pairs; wfc1[h] is the matching slice of fc1.weight,
    # already permuted for PyTorch's NCHW flatten.
    z = jnp.zeros((tb, 80), f32) + bfc1_ref[...]
    for h in range(4):
        z = z + jnp.dot(x3[:, h, :], wfc1_ref[h], preferred_element_type=f32)
    z = jnp.maximum(z, 0.0)

    # ---- fc2 (80 -> 10) + log_softmax ---------------------------------------
    logits = jnp.dot(z, wfc2_ref[...], preferred_element_type=f32) + bfc2_ref[...]
    mx = jnp.max(logits, axis=-1, keepdims=True)
    e = jnp.exp(logits - mx)
    lse = jnp.log(jnp.sum(e, axis=-1, keepdims=True))
    # Final output is inherently (B, 10): 40 B/image, so the narrow store is
    # negligible; everything upstream stays 128-lane-dense.
    o_ref[...] = (logits - mx - lse).astype(o_ref.dtype)


# ----------------------------------------------------------------------------
# Forward wrapper (one pallas_call for the whole network)
# ----------------------------------------------------------------------------
def cnn_fashion_forward(kparams, x):
    """x: (B, 1, 28, 28) float32 -> (B, 10) log-probabilities."""
    B = x.shape[0]
    tb = B if B < 8 else 8                    # batch tile (>= 8 images / step)
    b_pad = ((B + tb - 1) // tb) * tb
    xs = x.astype(jnp.float32).reshape(B, 28, 28)   # Cin == 1: free re-layout
    if b_pad != B:
        xs = jnp.concatenate(
            [xs, jnp.zeros((b_pad - B, 28, 28), jnp.float32)], axis=0)

    full3 = lambda i: (0, 0, 0)
    full2 = lambda i: (0, 0)
    out = pl.pallas_call(
        _cnn_fashion_kernel,
        out_shape=jax.ShapeDtypeStruct((b_pad, 10), jnp.float32),
        grid=(b_pad // tb,),
        in_specs=[
            pl.BlockSpec((tb, 28, 28), lambda i: (i, 0, 0)),   # images
            pl.BlockSpec((5, 28, 256), full3),                 # conv1 bands
            pl.BlockSpec((1, 256), full2),                     # conv1 bias
            pl.BlockSpec((5, 128, 256), full3),                # conv2 bands
            pl.BlockSpec((1, 256), full2),                     # conv2 bias
            pl.BlockSpec((4, 128, 80), full3),                 # fc1 weight
            pl.BlockSpec((1, 80), full2),                      # fc1 bias
            pl.BlockSpec((80, 10), full2),                     # fc2 weight
            pl.BlockSpec((1, 10), full2),                      # fc2 bias
        ],
        out_specs=pl.BlockSpec((tb, 10), lambda i: (i, 0)),
        scratch_shapes=[
            pltpu.VMEM((tb, 24, 128), jnp.float32),            # conv1 W-pooled
            pltpu.VMEM((tb, 8, 128), jnp.float32),             # conv2 W-pooled
        ],
        compiler_params=pltpu.CompilerParams(
            dimension_semantics=("parallel",)),                # megacore-shardable
    )(xs, kparams["band1"], kparams["bias1"], kparams["band2"],
      kparams["bias2"], kparams["wfc1"], kparams["bfc1"],
      kparams["wfc2"], kparams["bfc2"])
    return out[:B]


# ----------------------------------------------------------------------------
# One-time weight re-layout (torch layout -> kernel layout)
# ----------------------------------------------------------------------------
def prepare_params(params):
    w1 = np.asarray(params["conv1_w"], np.float32)   # (10, 1, 5, 5)
    b1 = np.asarray(params["conv1_b"], np.float32)
    w2 = np.asarray(params["conv2_w"], np.float32)   # (12, 10, 5, 5)
    b2 = np.asarray(params["conv2_b"], np.float32)
    fw1 = np.asarray(params["fc1_w"], np.float32)    # (80, 192); in = c*16+h*4+w
    fb1 = np.asarray(params["fc1_b"], np.float32)
    fw2 = np.asarray(params["fc2_w"], np.float32)    # (10, 80)
    fb2 = np.asarray(params["fc2_b"], np.float32)

    # conv1 banded weights: contraction over the 28 input columns (lanes).
    band1 = np.zeros((5, 28, 256), np.float32)
    bias1 = np.zeros((1, 256), np.float32)
    for p in range(2):                       # parity of the conv output column
        for woe in range(12):                # pooled output column
            for c in range(10):              # output channel
                col = p * 128 + woe * 10 + c
                bias1[0, col] = b1[c]
                for i in range(5):
                    for j in range(5):
                        band1[i, 2 * woe + p + j, col] = w1[c, 0, i, j]

    # conv2 banded weights: contraction over 120 (w, cin) lanes, padded to 128.
    band2 = np.zeros((5, 128, 256), np.float32)
    bias2 = np.zeros((1, 256), np.float32)
    for p in range(2):
        for woe in range(4):
            for c in range(12):
                col = p * 128 + woe * 12 + c
                bias2[0, col] = b2[c]
                for i in range(5):
                    for j in range(5):
                        for q in range(10):
                            band2[i, (2 * woe + p + j) * 10 + q, col] = w2[c, q, i, j]

    # fc1 weight permuted to consume the (h, w, c)-ordered pooled activations.
    wfc1 = np.zeros((4, 128, 80), np.float32)
    for h in range(4):
        for w in range(4):
            for c in range(12):
                wfc1[h, w * 12 + c, :] = fw1[:, c * 16 + h * 4 + w]

    return {
        "band1": jnp.asarray(band1), "bias1": jnp.asarray(bias1),
        "band2": jnp.asarray(band2), "bias2": jnp.asarray(bias2),
        "wfc1": jnp.asarray(wfc1), "bfc1": jnp.asarray(fb1.reshape(1, 80)),
        "wfc2": jnp.asarray(np.ascontiguousarray(fw2.T)),
        "bfc2": jnp.asarray(fb2.reshape(1, 10)),
    }


# ----------------------------------------------------------------------------
# Parameter init (torch-style layout) and a pure-JAX reference for validation
# ----------------------------------------------------------------------------
def init_params(key):
    ks = jax.random.split(key, 8)

    def uinit(k, shape, fan_in):
        bound = 1.0 / np.sqrt(fan_in)
        return jax.random.uniform(k, shape, jnp.float32, -bound, bound)

    return {
        "conv1_w": uinit(ks[0], (10, 1, 5, 5), 1 * 5 * 5),
        "conv1_b": uinit(ks[1], (10,), 1 * 5 * 5),
        "conv2_w": uinit(ks[2], (12, 10, 5, 5), 10 * 5 * 5),
        "conv2_b": uinit(ks[3], (12,), 10 * 5 * 5),
        "fc1_w": uinit(ks[4], (80, 192), 192),
        "fc1_b": uinit(ks[5], (80,), 192),
        "fc2_w": uinit(ks[6], (10, 80), 80),
        "fc2_b": uinit(ks[7], (10,), 80),
    }


def reference_forward(params, x):
    """Plain-JAX replica of the PyTorch module (for validation only)."""
    B = x.shape[0]
    dn = ("NCHW", "OIHW", "NCHW")
    hi = jax.lax.Precision.HIGHEST
    y = jax.lax.conv_general_dilated(x, params["conv1_w"], (1, 1), "VALID",
                                     dimension_numbers=dn, precision=hi)
    y = jnp.maximum(y + params["conv1_b"][None, :, None, None], 0.0)
    y = jnp.max(y.reshape(B, 10, 12, 2, 12, 2), axis=(3, 5))
    y = jax.lax.conv_general_dilated(y, params["conv2_w"], (1, 1), "VALID",
                                     dimension_numbers=dn, precision=hi)
    y = jnp.maximum(y + params["conv2_b"][None, :, None, None], 0.0)
    y = jnp.max(y.reshape(B, 12, 4, 2, 4, 2), axis=(3, 5))
    y = y.reshape(B, 192)
    y = jnp.maximum(y @ params["fc1_w"].T + params["fc1_b"], 0.0)
    y = y @ params["fc2_w"].T + params["fc2_b"]
    return jax.nn.log_softmax(y, axis=-1)


# ----------------------------------------------------------------------------
if __name__ == "__main__":
    key = jax.random.PRNGKey(0)
    pkey, xkey = jax.random.split(key)
    params = init_params(pkey)
    kparams = prepare_params(params)

    fwd = jax.jit(cnn_fashion_forward)

    for batch in (2, 19):          # single tile; multi-step grid + batch padding
        x = jax.random.normal(jax.random.fold_in(xkey, batch),
                              (batch, 1, 28, 28), jnp.float32)
        out = jax.block_until_ready(fwd(kparams, x))

        assert out.shape == (batch, 10), out.shape
        # log_softmax rows must exponentiate to ~1
        row_sums = np.asarray(jnp.sum(jnp.exp(out), axis=1))
        assert np.allclose(row_sums, 1.0, atol=1e-4), row_sums
        # match the pure-JAX reference of the PyTorch module
        ref = np.asarray(reference_forward(params, x))
        err = float(np.max(np.abs(np.asarray(out) - ref)))
        assert err < 2e-3, f"max abs err vs reference: {err}"

    print("KERNEL_OK")
</pallas_src>

<mosaic_0001>
module attributes {stable_mosaic.version = 11 : i64} {
  func.func @_cnn_fashion_kernel(%arg0: i32, %arg1: memref<2x28x28xf32, #tpu.memory_space<vmem>>, %arg2: memref<5x28x256xf32, #tpu.memory_space<vmem>>, %arg3: memref<1x256xf32, #tpu.memory_space<vmem>>, %arg4: memref<5x128x256xf32, #tpu.memory_space<vmem>>, %arg5: memref<1x256xf32, #tpu.memory_space<vmem>>, %arg6: memref<4x128x80xf32, #tpu.memory_space<vmem>>, %arg7: memref<1x80xf32, #tpu.memory_space<vmem>>, %arg8: memref<80x10xf32, #tpu.memory_space<vmem>>, %arg9: memref<1x10xf32, #tpu.memory_space<vmem>>, %arg10: memref<2x10xf32, #tpu.memory_space<vmem>>, %arg11: memref<2x24x128xf32, #tpu.memory_space<vmem>>, %arg12: memref<2x8x128xf32, #tpu.memory_space<vmem>>) attributes {dimension_semantics = [#tpu.dimension_semantics<parallel>], iteration_bounds = array<i64: 1>, scalar_prefetch = 0 : i64, scratch_operands = 2 : i64, tpu.core_type = #tpu.core_type<tc>, window_params = [{transform_indices = @transform_0, window_bounds = array<i64: 2, 28, 28>}, {pipeline_mode = #tpu.pipeline_mode<synchronous>, transform_indices = @transform_1, window_bounds = array<i64: 5, 28, 256>}, {pipeline_mode = #tpu.pipeline_mode<synchronous>, transform_indices = @transform_2, window_bounds = array<i64: 1, 256>}, {pipeline_mode = #tpu.pipeline_mode<synchronous>, transform_indices = @transform_3, window_bounds = array<i64: 5, 128, 256>}, {pipeline_mode = #tpu.pipeline_mode<synchronous>, transform_indices = @transform_4, window_bounds = array<i64: 1, 256>}, {pipeline_mode = #tpu.pipeline_mode<synchronous>, transform_indices = @transform_5, window_bounds = array<i64: 4, 128, 80>}, {pipeline_mode = #tpu.pipeline_mode<synchronous>, transform_indices = @transform_6, window_bounds = array<i64: 1, 80>}, {pipeline_mode = #tpu.pipeline_mode<synchronous>, transform_indices = @transform_7, window_bounds = array<i64: 80, 10>}, {pipeline_mode = #tpu.pipeline_mode<synchronous>, transform_indices = @transform_8, window_bounds = array<i64: 1, 10>}, {transform_indices = @transform_9, window_bounds = array<i64: 2, 10>}]} {
    %cst = arith.constant 0.000000e+00 : f32
    %0 = vector.broadcast %cst : f32 to vector<48x256xf32>
    %c0 = arith.constant 0 : index
    %c0_0 = arith.constant 0 : index
    %c0_1 = arith.constant 0 : index
    %1 = vector.load %arg1[%c0, %c0_0, %c0_1] : memref<2x28x28xf32, #tpu.memory_space<vmem>>, vector<2x24x28xf32>
    %2 = vector.shape_cast %1 : vector<2x24x28xf32> to vector<48x28xf32>
    %c0_2 = arith.constant 0 : index
    %c0_3 = arith.constant 0 : index
    %c0_4 = arith.constant 0 : index
    %3 = vector.load %arg2[%c0_2, %c0_3, %c0_4] : memref<5x28x256xf32, #tpu.memory_space<vmem>>, vector<1x28x256xf32>
    %4 = vector.shape_cast %3 : vector<1x28x256xf32> to vector<28x256xf32>
    %cst_5 = arith.constant dense<0.000000e+00> : vector<48x256xf32>
    %5 = tpu.matmul %2, %4, %cst_5 {dimension_numbers = #tpu.dot_dimension_numbers<[1], [0], [0], [1], [0, 0, 1, 1], [], []>} : vector<48x28xf32>, vector<28x256xf32>, vector<48x256xf32> -> vector<48x256xf32>
    %6 = arith.addf %0, %5 : vector<48x256xf32>
    %c0_6 = arith.constant 0 : index
    %c1 = arith.constant 1 : index
    %c0_7 = arith.constant 0 : index
    %7 = vector.load %arg1[%c0_6, %c1, %c0_7] : memref<2x28x28xf32, #tpu.memory_space<vmem>>, vector<2x24x28xf32>
    %8 = vector.shape_cast %7 : vector<2x24x28xf32> to vector<48x28xf32>
    %c1_8 = arith.constant 1 : index
    %c0_9 = arith.constant 0 : index
    %c0_10 = arith.constant 0 : index
    %9 = vector.load %arg2[%c1_8, %c0_9, %c0_10] : memref<5x28x256xf32, #tpu.memory_space<vmem>>, vector<1x28x256xf32>
    %10 = vector.shape_cast %9 : vector<1x28x256xf32> to vector<28x256xf32>
    %cst_11 = arith.constant dense<0.000000e+00> : vector<48x256xf32>
    %11 = tpu.matmul %8, %10, %cst_11 {dimension_numbers = #tpu.dot_dimension_numbers<[1], [0], [0], [1], [0, 0, 1, 1], [], []>} : vector<48x28xf32>, vector<28x256xf32>, vector<48x256xf32> -> vector<48x256xf32>
    %12 = arith.addf %6, %11 : vector<48x256xf32>
    %c0_12 = arith.constant 0 : index
    %c2 = arith.constant 2 : index
    %c0_13 = arith.constant 0 : index
    %13 = vector.load %arg1[%c0_12, %c2, %c0_13] : memref<2x28x28xf32, #tpu.memory_space<vmem>>, vector<2x24x28xf32>
    %14 = vector.shape_cast %13 : vector<2x24x28xf32> to vector<48x28xf32>
    %c2_14 = arith.constant 2 : index
    %c0_15 = arith.constant 0 : index
    %c0_16 = arith.constant 0 : index
    %15 = vector.load %arg2[%c2_14, %c0_15, %c0_16] : memref<5x28x256xf32, #tpu.memory_space<vmem>>, vector<1x28x256xf32>
    %16 = vector.shape_cast %15 : vector<1x28x256xf32> to vector<28x256xf32>
    %cst_17 = arith.constant dense<0.000000e+00> : vector<48x256xf32>
    %17 = tpu.matmul %14, %16, %cst_17 {dimension_numbers = #tpu.dot_dimension_numbers<[1], [0], [0], [1], [0, 0, 1, 1], [], []>} : vector<48x28xf32>, vector<28x256xf32>, vector<48x256xf32> -> vector<48x256xf32>
    %18 = arith.addf %12, %17 : vector<48x256xf32>
    %c0_18 = arith.constant 0 : index
    %c3 = arith.constant 3 : index
    %c0_19 = arith.constant 0 : index
    %19 = vector.load %arg1[%c0_18, %c3, %c0_19] : memref<2x28x28xf32, #tpu.memory_space<vmem>>, vector<2x24x28xf32>
    %20 = vector.shape_cast %19 : vector<2x24x28xf32> to vector<48x28xf32>
    %c3_20 = arith.constant 3 : index
    %c0_21 = arith.constant 0 : index
    %c0_22 = arith.constant 0 : index
    %21 = vector.load %arg2[%c3_20, %c0_21, %c0_22] : memref<5x28x256xf32, #tpu.memory_space<vmem>>, vector<1x28x256xf32>
    %22 = vector.shape_cast %21 : vector<1x28x256xf32> to vector<28x256xf32>
    %cst_23 = arith.constant dense<0.000000e+00> : vector<48x256xf32>
    %23 = tpu.matmul %20, %22, %cst_23 {dimension_numbers = #tpu.dot_dimension_numbers<[1], [0], [0], [1], [0, 0, 1, 1], [], []>} : vector<48x28xf32>, vector<28x256xf32>, vector<48x256xf32> -> vector<48x256xf32>
    %24 = arith.addf %18, %23 : vector<48x256xf32>
    %c0_24 = arith.constant 0 : index
    %c4 = arith.constant 4 : index
    %c0_25 = arith.constant 0 : index
    %25 = vector.load %arg1[%c0_24, %c4, %c0_25] : memref<2x28x28xf32, #tpu.memory_space<vmem>>, vector<2x24x28xf32>
    %26 = vector.shape_cast %25 : vector<2x24x28xf32> to vector<48x28xf32>
    %c4_26 = arith.constant 4 : index
    %c0_27 = arith.constant 0 : index
    %c0_28 = arith.constant 0 : index
    %27 = vector.load %arg2[%c4_26, %c0_27, %c0_28] : memref<5x28x256xf32, #tpu.memory_space<vmem>>, vector<1x28x256xf32>
    %28 = vector.shape_cast %27 : vector<1x28x256xf32> to vector<28x256xf32>
    %cst_29 = arith.constant dense<0.000000e+00> : vector<48x256xf32>
    %29 = tpu.matmul %26, %28, %cst_29 {dimension_numbers = #tpu.dot_dimension_numbers<[1], [0], [0], [1], [0, 0, 1, 1], [], []>} : vector<48x28xf32>, vector<28x256xf32>, vector<48x256xf32> -> vector<48x256xf32>
    %30 = arith.addf %24, %29 : vector<48x256xf32>
    %c0_30 = arith.constant 0 : index
    %c0_31 = arith.constant 0 : index
    %31 = vector.load %arg3[%c0_30, %c0_31] : memref<1x256xf32, #tpu.memory_space<vmem>>, vector<1x256xf32>
    %32 = vector.broadcast %31 : vector<1x256xf32> to vector<48x256xf32>
    %33 = arith.addf %30, %32 : vector<48x256xf32>
    %cst_32 = arith.constant 0.000000e+00 : f32
    %34 = vector.broadcast %cst_32 : f32 to vector<48x256xf32>
    %35 = arith.maximumf %33, %34 : vector<48x256xf32>
    %36 = vector.extract_strided_slice %35 {offsets = [0, 0], sizes = [48, 128], strides = [1, 1]} : vector<48x256xf32> to vector<48x128xf32>
    %37 = vector.extract_strided_slice %35 {offsets = [0, 128], sizes = [48, 128], strides = [1, 1]} : vector<48x256xf32> to vector<48x128xf32>
    %38 = arith.maximumf %36, %37 : vector<48x128xf32>
    %39 = vector.shape_cast %38 : vector<48x128xf32> to vector<2x24x128xf32>
    %c0_33 = arith.constant 0 : index
    %c0_34 = arith.constant 0 : index
    %c0_35 = arith.constant 0 : index
    %40 = vector.load %arg11[%c0_33, %c0_34, %c0_35] : memref<2x24x128xf32, #tpu.memory_space<vmem>>, vector<2x24x128xf32>
    tpu.vector_store %arg11[%c0_33, %c0_34, %c0_35], %39 {strides = array<i32>} : memref<2x24x128xf32, #tpu.memory_space<vmem>>, vector<2x24x128xf32>,
    %c0_36 = arith.constant 0 : index
    %c0_37 = arith.constant 0 : index
    %c0_38 = arith.constant 0 : index
    %41 = tpu.strided_load %arg11[%c0_36, %c0_37, %c0_38] {strides = array<i32: 1, 2, 1>} : memref<2x24x128xf32, #tpu.memory_space<vmem>>, vector<2x12x128xf32>
    %c0_39 = arith.constant 0 : index
    %c1_40 = arith.constant 1 : index
    %c0_41 = arith.constant 0 : index
    %42 = tpu.strided_load %arg11[%c0_39, %c1_40, %c0_41] {strides = array<i32: 1, 2, 1>} : memref<2x24x128xf32, #tpu.memory_space<vmem>>, vector<2x12x128xf32>
    %43 = arith.maximumf %41, %42 : vector<2x12x128xf32>
    %cst_42 = arith.constant 0.000000e+00 : f32
    %44 = vector.broadcast %cst_42 : f32 to vector<16x256xf32>
    %45 = vector.extract_strided_slice %43 {offsets = [0, 0, 0], sizes = [2, 8, 128], strides = [1, 1, 1]} : vector<2x12x128xf32> to vector<2x8x128xf32>
    %46 = vector.shape_cast %45 : vector<2x8x128xf32> to vector<16x128xf32>
    %c0_43 = arith.constant 0 : index
    %c0_44 = arith.constant 0 : index
    %c0_45 = arith.constant 0 : index
    %47 = vector.load %arg4[%c0_43, %c0_44, %c0_45] : memref<5x128x256xf32, #tpu.memory_space<vmem>>, vector<1x128x256xf32>
    %48 = vector.shape_cast %47 : vector<1x128x256xf32> to vector<128x256xf32>
    %cst_46 = arith.constant dense<0.000000e+00> : vector<16x256xf32>
    %49 = tpu.matmul %46, %48, %cst_46 {dimension_numbers = #tpu.dot_dimension_numbers<[1], [0], [0], [1], [0, 0, 1, 1], [], []>} : vector<16x128xf32>, vector<128x256xf32>, vector<16x256xf32> -> vector<16x256xf32>
    %50 = arith.addf %44, %49 : vector<16x256xf32>
    %51 = vector.extract_strided_slice %43 {offsets = [0, 1, 0], sizes = [2, 8, 128], strides = [1, 1, 1]} : vector<2x12x128xf32> to vector<2x8x128xf32>
    %52 = vector.shape_cast %51 : vector<2x8x128xf32> to vector<16x128xf32>
    %c1_47 = arith.constant 1 : index
    %c0_48 = arith.constant 0 : index
    %c0_49 = arith.constant 0 : index
    %53 = vector.load %arg4[%c1_47, %c0_48, %c0_49] : memref<5x128x256xf32, #tpu.memory_space<vmem>>, vector<1x128x256xf32>
    %54 = vector.shape_cast %53 : vector<1x128x256xf32> to vector<128x256xf32>
    %cst_50 = arith.constant dense<0.000000e+00> : vector<16x256xf32>
    %55 = tpu.matmul %52, %54, %cst_50 {dimension_numbers = #tpu.dot_dimension_numbers<[1], [0], [0], [1], [0, 0, 1, 1], [], []>} : vector<16x128xf32>, vector<128x256xf32>, vector<16x256xf32> -> vector<16x256xf32>
    %56 = arith.addf %50, %55 : vector<16x256xf32>
    %57 = vector.extract_strided_slice %43 {offsets = [0, 2, 0], sizes = [2, 8, 128], strides = [1, 1, 1]} : vector<2x12x128xf32> to vector<2x8x128xf32>
    %58 = vector.shape_cast %57 : vector<2x8x128xf32> to vector<16x128xf32>
    %c2_51 = arith.constant 2 : index
    %c0_52 = arith.constant 0 : index
    %c0_53 = arith.constant 0 : index
    %59 = vector.load %arg4[%c2_51, %c0_52, %c0_53] : memref<5x128x256xf32, #tpu.memory_space<vmem>>, vector<1x128x256xf32>
    %60 = vector.shape_cast %59 : vector<1x128x256xf32> to vector<128x256xf32>
    %cst_54 = arith.constant dense<0.000000e+00> : vector<16x256xf32>
    %61 = tpu.matmul %58, %60, %cst_54 {dimension_numbers = #tpu.dot_dimension_numbers<[1], [0], [0], [1], [0, 0, 1, 1], [], []>} : vector<16x128xf32>, vector<128x256xf32>, vector<16x256xf32> -> vector<16x256xf32>
    %62 = arith.addf %56, %61 : vector<16x256xf32>
    %63 = vector.extract_strided_slice %43 {offsets = [0, 3, 0], sizes = [2, 8, 128], strides = [1, 1, 1]} : vector<2x12x128xf32> to vector<2x8x128xf32>
    %64 = vector.shape_cast %63 : vector<2x8x128xf32> to vector<16x128xf32>
    %c3_55 = arith.constant 3 : index
    %c0_56 = arith.constant 0 : index
    %c0_57 = arith.constant 0 : index
    %65 = vector.load %arg4[%c3_55, %c0_56, %c0_57] : memref<5x128x256xf32, #tpu.memory_space<vmem>>, vector<1x128x256xf32>
    %66 = vector.shape_cast %65 : vector<1x128x256xf32> to vector<128x256xf32>
    %cst_58 = arith.constant dense<0.000000e+00> : vector<16x256xf32>
    %67 = tpu.matmul %64, %66, %cst_58 {dimension_numbers = #tpu.dot_dimension_numbers<[1], [0], [0], [1], [0, 0, 1, 1], [], []>} : vector<16x128xf32>, vector<128x256xf32>, vector<16x256xf32> -> vector<16x256xf32>
    %68 = arith.addf %62, %67 : vector<16x256xf32>
    %69 = vector.extract_strided_slice %43 {offsets = [0, 4, 0], sizes = [2, 8, 128], strides = [1, 1, 1]} : vector<2x12x128xf32> to vector<2x8x128xf32>
    %70 = vector.shape_cast %69 : vector<2x8x128xf32> to vector<16x128xf32>
    %c4_59 = arith.constant 4 : index
    %c0_60 = arith.constant 0 : index
    %c0_61 = arith.constant 0 : index
    %71 = vector.load %arg4[%c4_59, %c0_60, %c0_61] : memref<5x128x256xf32, #tpu.memory_space<vmem>>, vector<1x128x256xf32>
    %72 = vector.shape_cast %71 : vector<1x128x256xf32> to vector<128x256xf32>
    %cst_62 = arith.constant dense<0.000000e+00> : vector<16x256xf32>
    %73 = tpu.matmul %70, %72, %cst_62 {dimension_numbers = #tpu.dot_dimension_numbers<[1], [0], [0], [1], [0, 0, 1, 1], [], []>} : vector<16x128xf32>, vector<128x256xf32>, vector<16x256xf32> -> vector<16x256xf32>
    %74 = arith.addf %68, %73 : vector<16x256xf32>
    %c0_63 = arith.constant 0 : index
    %c0_64 = arith.constant 0 : index
    %75 = vector.load %arg5[%c0_63, %c0_64] : memref<1x256xf32, #tpu.memory_space<vmem>>, vector<1x256xf32>
    %76 = vector.broadcast %75 : vector<1x256xf32> to vector<16x256xf32>
    %77 = arith.addf %74, %76 : vector<16x256xf32>
    %cst_65 = arith.constant 0.000000e+00 : f32
    %78 = vector.broadcast %cst_65 : f32 to vector<16x256xf32>
    %79 = arith.maximumf %77, %78 : vector<16x256xf32>
    %80 = vector.extract_strided_slice %79 {offsets = [0, 0], sizes = [16, 128], strides = [1, 1]} : vector<16x256xf32> to vector<16x128xf32>
    %81 = vector.extract_strided_slice %79 {offsets = [0, 128], sizes = [16, 128], strides = [1, 1]} : vector<16x256xf32> to vector<16x128xf32>
    %82 = arith.maximumf %80, %81 : vector<16x128xf32>
    %83 = vector.shape_cast %82 : vector<16x128xf32> to vector<2x8x128xf32>
    %c0_66 = arith.constant 0 : index
    %c0_67 = arith.constant 0 : index
    %c0_68 = arith.constant 0 : index
    %84 = vector.load %arg12[%c0_66, %c0_67, %c0_68] : memref<2x8x128xf32, #tpu.memory_space<vmem>>, vector<2x8x128xf32>
    tpu.vector_store %arg12[%c0_66, %c0_67, %c0_68], %83 {strides = array<i32>} : memref<2x8x128xf32, #tpu.memory_space<vmem>>, vector<2x8x128xf32>,
    %c0_69 = arith.constant 0 : index
    %c0_70 = arith.constant 0 : index
    %c0_71 = arith.constant 0 : index
    %85 = tpu.strided_load %arg12[%c0_69, %c0_70, %c0_71] {strides = array<i32: 1, 2, 1>} : memref<2x8x128xf32, #tpu.memory_space<vmem>>, vector<2x4x128xf32>
    %c0_72 = arith.constant 0 : index
    %c1_73 = arith.constant 1 : index
    %c0_74 = arith.constant 0 : index
    %86 = tpu.strided_load %arg12[%c0_72, %c1_73, %c0_74] {strides = array<i32: 1, 2, 1>} : memref<2x8x128xf32, #tpu.memory_space<vmem>>, vector<2x4x128xf32>
    %87 = arith.maximumf %85, %86 : vector<2x4x128xf32>
    %cst_75 = arith.constant 0.000000e+00 : f32
    %88 = vector.broadcast %cst_75 : f32 to vector<2x80xf32>
    %c0_76 = arith.constant 0 : index
    %c0_77 = arith.constant 0 : index
    %89 = vector.load %arg7[%c0_76, %c0_77] : memref<1x80xf32, #tpu.memory_space<vmem>>, vector<1x80xf32>
    %90 = vector.broadcast %89 : vector<1x80xf32> to vector<2x80xf32>
    %91 = arith.addf %88, %90 : vector<2x80xf32>
    %92 = vector.extract_strided_slice %87 {offsets = [0, 0, 0], sizes = [2, 1, 128], strides = [1, 1, 1]} : vector<2x4x128xf32> to vector<2x1x128xf32>
    %93 = vector.shape_cast %92 : vector<2x1x128xf32> to vector<2x128xf32>
    %c0_78 = arith.constant 0 : index
    %c0_79 = arith.constant 0 : index
    %c0_80 = arith.constant 0 : index
    %94 = vector.load %arg6[%c0_78, %c0_79, %c0_80] : memref<4x128x80xf32, #tpu.memory_space<vmem>>, vector<1x128x80xf32>
    %95 = vector.shape_cast %94 : vector<1x128x80xf32> to vector<128x80xf32>
    %cst_81 = arith.constant dense<0.000000e+00> : vector<2x80xf32>
    %96 = tpu.matmul %93, %95, %cst_81 {dimension_numbers = #tpu.dot_dimension_numbers<[1], [0], [0], [1], [0, 0, 1, 1], [], []>} : vector<2x128xf32>, vector<128x80xf32>, vector<2x80xf32> -> vector<2x80xf32>
    %97 = arith.addf %91, %96 : vector<2x80xf32>
    %98 = vector.extract_strided_slice %87 {offsets = [0, 1, 0], sizes = [2, 1, 128], strides = [1, 1, 1]} : vector<2x4x128xf32> to vector<2x1x128xf32>
    %99 = vector.shape_cast %98 : vector<2x1x128xf32> to vector<2x128xf32>
    %c1_82 = arith.constant 1 : index
    %c0_83 = arith.constant 0 : index
    %c0_84 = arith.constant 0 : index
    %100 = vector.load %arg6[%c1_82, %c0_83, %c0_84] : memref<4x128x80xf32, #tpu.memory_space<vmem>>, vector<1x128x80xf32>
    %101 = vector.shape_cast %100 : vector<1x128x80xf32> to vector<128x80xf32>
    %cst_85 = arith.constant dense<0.000000e+00> : vector<2x80xf32>
    %102 = tpu.matmul %99, %101, %cst_85 {dimension_numbers = #tpu.dot_dimension_numbers<[1], [0], [0], [1], [0, 0, 1, 1], [], []>} : vector<2x128xf32>, vector<128x80xf32>, vector<2x80xf32> -> vector<2x80xf32>
    %103 = arith.addf %97, %102 : vector<2x80xf32>
    %104 = vector.extract_strided_slice %87 {offsets = [0, 2, 0], sizes = [2, 1, 128], strides = [1, 1, 1]} : vector<2x4x128xf32> to vector<2x1x128xf32>
    %105 = vector.shape_cast %104 : vector<2x1x128xf32> to vector<2x128xf32>
    %c2_86 = arith.constant 2 : index
    %c0_87 = arith.constant 0 : index
    %c0_88 = arith.constant 0 : index
    %106 = vector.load %arg6[%c2_86, %c0_87, %c0_88] : memref<4x128x80xf32, #tpu.memory_space<vmem>>, vector<1x128x80xf32>
    %107 = vector.shape_cast %106 : vector<1x128x80xf32> to vector<128x80xf32>
    %cst_89 = arith.constant dense<0.000000e+00> : vector<2x80xf32>
    %108 = tpu.matmul %105, %107, %cst_89 {dimension_numbers = #tpu.dot_dimension_numbers<[1], [0], [0], [1], [0, 0, 1, 1], [], []>} : vector<2x128xf32>, vector<128x80xf32>, vector<2x80xf32> -> vector<2x80xf32>
    %109 = arith.addf %103, %108 : vector<2x80xf32>
    %110 = vector.extract_strided_slice %87 {offsets = [0, 3, 0], sizes = [2, 1, 128], strides = [1, 1, 1]} : vector<2x4x128xf32> to vector<2x1x128xf32>
    %111 = vector.shape_cast %110 : vector<2x1x128xf32> to vector<2x128xf32>
    %c3_90 = arith.constant 3 : index
    %c0_91 = arith.constant 0 : index
    %c0_92 = arith.constant 0 : index
    %112 = vector.load %arg6[%c3_90, %c0_91, %c0_92] : memref<4x128x80xf32, #tpu.memory_space<vmem>>, vector<1x128x80xf32>
    %113 = vector.shape_cast %112 : vector<1x128x80xf32> to vector<128x80xf32>
    %cst_93 = arith.constant dense<0.000000e+00> : vector<2x80xf32>
    %114 = tpu.matmul %111, %113, %cst_93 {dimension_numbers = #tpu.dot_dimension_numbers<[1], [0], [0], [1], [0, 0, 1, 1], [], []>} : vector<2x128xf32>, vector<128x80xf32>, vector<2x80xf32> -> vector<2x80xf32>
    %115 = arith.addf %109, %114 : vector<2x80xf32>
    %cst_94 = arith.constant 0.000000e+00 : f32
    %116 = vector.broadcast %cst_94 : f32 to vector<2x80xf32>
    %117 = arith.maximumf %115, %116 : vector<2x80xf32>
    %c0_95 = arith.constant 0 : index
    %c0_96 = arith.constant 0 : index
    %118 = vector.load %arg8[%c0_95, %c0_96] : memref<80x10xf32, #tpu.memory_space<vmem>>, vector<80x10xf32>
    %cst_97 = arith.constant dense<0.000000e+00> : vector<2x10xf32>
    %119 = tpu.matmul %117, %118, %cst_97 {dimension_numbers = #tpu.dot_dimension_numbers<[1], [0], [0], [1], [0, 0, 1, 1], [], []>} : vector<2x80xf32>, vector<80x10xf32>, vector<2x10xf32> -> vector<2x10xf32>
    %c0_98 = arith.constant 0 : index
    %c0_99 = arith.constant 0 : index
    %120 = vector.load %arg9[%c0_98, %c0_99] : memref<1x10xf32, #tpu.memory_space<vmem>>, vector<1x10xf32>
    %121 = vector.broadcast %120 : vector<1x10xf32> to vector<2x10xf32>
    %122 = arith.addf %119, %121 : vector<2x10xf32>
    %cst_100 = arith.constant dense<0xFF800000> : vector<2xf32>
    %123 = vector.multi_reduction <maximumf>, %122, %cst_100 [1] : vector<2x10xf32> to vector<2xf32>
    %124 = vector.shape_cast %123 : vector<2xf32> to vector<2x1xf32>
    %125 = vector.broadcast %124 : vector<2x1xf32> to vector<2x10xf32>
    %126 = arith.subf %122, %125 : vector<2x10xf32>
    %127 = math.exp %126 : vector<2x10xf32>
    %cst_101 = arith.constant dense<0.000000e+00> : vector<2xf32>
    %128 = vector.multi_reduction <add>, %127, %cst_101 [1] : vector<2x10xf32> to vector<2xf32>
    %129 = vector.shape_cast %128 : vector<2xf32> to vector<2x1xf32>
    %130 = math.log %129 : vector<2x1xf32>
    %131 = vector.broadcast %124 : vector<2x1xf32> to vector<2x10xf32>
    %132 = arith.subf %122, %131 : vector<2x10xf32>
    %133 = vector.broadcast %130 : vector<2x1xf32> to vector<2x10xf32>
    %134 = arith.subf %132, %133 : vector<2x10xf32>
    %c0_102 = arith.constant 0 : index
    %c0_103 = arith.constant 0 : index
    %135 = vector.load %arg10[%c0_102, %c0_103] : memref<2x10xf32, #tpu.memory_space<vmem>>, vector<2x10xf32>
    tpu.vector_store %arg10[%c0_102, %c0_103], %134 {strides = array<i32>} : memref<2x10xf32, #tpu.memory_space<vmem>>, vector<2x10xf32>,
    return
  }
  func.func @transform_0(%arg0: i32) -> (i32, i32, i32) {
    %c0_i32 = arith.constant 0 : i32
    %c0_i32_0 = arith.constant 0 : i32
    %c0_i32_1 = arith.constant 0 : i32
    return %arg0, %c0_i32, %c0_i32_0 : i32, i32, i32
  }
  func.func @transform_1(%arg0: i32) -> (i32, i32, i32) {
    %c0_i32 = arith.constant 0 : i32
    %c0_i32_0 = arith.constant 0 : i32
    %c0_i32_1 = arith.constant 0 : i32
    %c0_i32_2 = arith.constant 0 : i32
    return %c0_i32, %c0_i32_0, %c0_i32_1 : i32, i32, i32
  }
  func.func @transform_2(%arg0: i32) -> (i32, i32) {
    %c0_i32 = arith.constant 0 : i32
    %c0_i32_0 = arith.constant 0 : i32
    %c0_i32_1 = arith.constant 0 : i32
    return %c0_i32, %c0_i32_0 : i32, i32
  }
  func.func @transform_3(%arg0: i32) -> (i32, i32, i32) {
    %c0_i32 = arith.constant 0 : i32
    %c0_i32_0 = arith.constant 0 : i32
    %c0_i32_1 = arith.constant 0 : i32
    %c0_i32_2 = arith.constant 0 : i32
    return %c0_i32, %c0_i32_0, %c0_i32_1 : i32, i32, i32
  }
  func.func @transform_4(%arg0: i32) -> (i32, i32) {
    %c0_i32 = arith.constant 0 : i32
    %c0_i32_0 = arith.constant 0 : i32
    %c0_i32_1 = arith.constant 0 : i32
    return %c0_i32, %c0_i32_0 : i32, i32
  }
  func.func @transform_5(%arg0: i32) -> (i32, i32, i32) {
    %c0_i32 = arith.constant 0 : i32
    %c0_i32_0 = arith.constant 0 : i32
    %c0_i32_1 = arith.constant 0 : i32
    %c0_i32_2 = arith.constant 0 : i32
    return %c0_i32, %c0_i32_0, %c0_i32_1 : i32, i32, i32
  }
  func.func @transform_6(%arg0: i32) -> (i32, i32) {
    %c0_i32 = arith.constant 0 : i32
    %c0_i32_0 = arith.constant 0 : i32
    %c0_i32_1 = arith.constant 0 : i32
    return %c0_i32, %c0_i32_0 : i32, i32
  }
  func.func @transform_7(%arg0: i32) -> (i32, i32) {
    %c0_i32 = arith.constant 0 : i32
    %c0_i32_0 = arith.constant 0 : i32
    %c0_i32_1 = arith.constant 0 : i32
    return %c0_i32, %c0_i32_0 : i32, i32
  }
  func.func @transform_8(%arg0: i32) -> (i32, i32) {
    %c0_i32 = arith.constant 0 : i32
    %c0_i32_0 = arith.constant 0 : i32
    %c0_i32_1 = arith.constant 0 : i32
    return %c0_i32, %c0_i32_0 : i32, i32
  }
  func.func @transform_9(%arg0: i32) -> (i32, i32) {
    %c0_i32 = arith.constant 0 : i32
    %c0_i32_0 = arith.constant 0 : i32
    return %arg0, %c0_i32 : i32, i32
  }
}

</mosaic_0001>

<llo_original>
// kernel: cnn_fashion_forward.1
$region0: #{cnn_fashion_forward.1}
  #allocation0 [shape = 'u32[]', space=smem, size = 0x4, offset = 0x4, fixed_abs, tag = 'smem constant byte address 0x4 - core index']
  #allocation1 [shape = 'u32[144,128]{1,0:T(1,128)}', space=vmem, size = 0x12000, scoped, tag = 'internal scratch']
  #allocation2 [shape = 'f32[2,24,128]{2,1,0:T(8,128)}', space=vmem, size = 0x6000, scoped, tag = 'scratch operand']
  #allocation3 [shape = 'f32[2,8,128]{2,1,0:T(8,128)}', space=vmem, size = 0x2000, scoped, tag = 'scratch operand']
  %s0 = inlined_call_operand.vmem [shape: f32[2,28,28], index: 0, kind: input, shape index: {}]
  %s1 = inlined_call_operand.vmem [shape: f32[5,28,256], index: 1, kind: input, shape index: {}]
  %s2 = inlined_call_operand.vmem [shape: f32[1,256], index: 2, kind: input, shape index: {}]
  %s3 = inlined_call_operand.hbm [shape: f32[5,128,256], index: 3, kind: input, shape index: {}]
  %s4 = inlined_call_operand.vmem [shape: f32[1,256], index: 4, kind: input, shape index: {}]
  %s5 = inlined_call_operand.vmem [shape: f32[4,128,80], index: 5, kind: input, shape index: {}]
  %s6 = inlined_call_operand.vmem [shape: f32[1,80], index: 6, kind: input, shape index: {}]
  %s7 = inlined_call_operand.vmem [shape: f32[80,10], index: 7, kind: input, shape index: {}]
  %s8 = inlined_call_operand.vmem [shape: f32[1,10], index: 8, kind: input, shape index: {}]
  %s9 = inlined_call_operand.hbm [shape: f32[2,10], index: 9, kind: output, shape index: {}]
  %s10 = sld [smem:[#allocation0]]
  $region50: #{cnn_fashion_forward.1} parent=0
    _
  %s12 = ssub.s32 1, %s10
  %s13 = scalar_select 0, %s12, %s10
  $region1: #{cnn_fashion_forward.1} parent=0
    #allocation4 [shape = 'u8[655360]{0}', space=vmem, size = 0xa0000, scoped, tag = 'input window, operand 3, single buffered']
    #allocation5 [shape = 's32[1]{0}', space=sflag, size = 0x4, scoped, tag = 'scoped memory for cnn_fashion_forward.1']
    #allocation6 [shape = 's32[1]{0}', space=sflag, size = 0x4, scoped, tag = 'scoped memory for cnn_fashion_forward.1']
    #allocation7 [shape = 'u8[1024]{0}', space=vmem, size = 0x400, scoped, tag = 'output window, operand 0, single buffered']
    %14 = vsyncpa [#allocation5], 0
    %15 = vsyncpa [#allocation6], 0
    // Predicated region
    $region2: #{cnn_fashion_forward.1} parent=1 // pred_check
      _
    $region3: #{cnn_fashion_forward.1} parent=1 // pred_check_branch
      %17 = sbr.rel (0) target = $region5
    $region4: #{cnn_fashion_forward.1} parent=1 // pred_region
      _
    $region5: #{cnn_fashion_forward.1} parent=1 // pred_fallthru
      _
    // Predicated region
    $region6: #{cnn_fashion_forward.1} parent=1 // pred_check
      _
    $region7: #{cnn_fashion_forward.1} parent=1 // pred_check_branch
      %19 = sbr.rel (0) target = $region9
    $region8: #{cnn_fashion_forward.1} parent=1 // pred_region
      _
    $region9: #{cnn_fashion_forward.1} parent=1 // pred_fallthru
      _
    // Predicated region
    $region10: #{cnn_fashion_forward.1} parent=1 // pred_check
      _
    $region11: #{cnn_fashion_forward.1} parent=1 // pred_check_branch
      %21 = sbr.rel (0) target = $region13
    $region12: #{cnn_fashion_forward.1} parent=1 // pred_region
      _
    $region13: #{cnn_fashion_forward.1} parent=1 // pred_fallthru
      _
    // Predicated region
    $region14: #{cnn_fashion_forward.1} parent=1 // pred_check
      _
    $region15: #{cnn_fashion_forward.1} parent=1 // pred_check_branch
      %23 = sbr.rel (0) target = $region17
    $region16: #{cnn_fashion_forward.1} parent=1 // pred_region
      %s25 = ssub.s32 20480, 20480
      %26 = vsyncadd [#allocation5], %s25
      %s27 = sshll.u32 [#allocation4], 4
      %s28 = int_to_ptr.vmem [resolvable:$true] %s27
      %33 = dma.hbm_to_vmem [thread:$0]  %s3, 20480, %s28, [#allocation5], 256, 256, 16
    $region17: #{cnn_fashion_forward.1} parent=1 // pred_fallthru
      _
    // Predicated region
    $region18: #{cnn_fashion_forward.1} parent=1 // pred_check
      _
    $region19: #{cnn_fashion_forward.1} parent=1 // pred_check_branch
      %35 = sbr.rel (0) target = $region21
    $region20: #{cnn_fashion_forward.1} parent=1 // pred_region
      _
    $region21: #{cnn_fashion_forward.1} parent=1 // pred_fallthru
      _
    // Predicated region
    $region22: #{cnn_fashion_forward.1} parent=1 // pred_check
      _
    $region23: #{cnn_fashion_forward.1} parent=1 // pred_check_branch
      %37 = sbr.rel (0) target = $region25
    $region24: #{cnn_fashion_forward.1} parent=1 // pred_region
      _
    $region25: #{cnn_fashion_forward.1} parent=1 // pred_fallthru
      _
    // Predicated region
    $region26: #{cnn_fashion_forward.1} parent=1 // pred_check
      _
    $region27: #{cnn_fashion_forward.1} parent=1 // pred_check_branch
      %39 = sbr.rel (0) target = $region29
    $region28: #{cnn_fashion_forward.1} parent=1 // pred_region
      _
    $region29: #{cnn_fashion_forward.1} parent=1 // pred_fallthru
      _
    // Predicated region
    $region30: #{cnn_fashion_forward.1} parent=1 // pred_check
      _
    $region31: #{cnn_fashion_forward.1} parent=1 // pred_check_branch
      %41 = sbr.rel (0) target = $region33
    $region32: #{cnn_fashion_forward.1} parent=1 // pred_region
      _
    $region33: #{cnn_fashion_forward.1} parent=1 // pred_fallthru
      _
    // Predicated region
    $region34: #{cnn_fashion_forward.1} parent=1 // pred_check
      _
    $region35: #{cnn_fashion_forward.1} parent=1 // pred_check_branch
      %43 = sbr.rel (0) target = $region37
    $region36: #{cnn_fashion_forward.1} parent=1 // pred_region
      _
    $region37: #{cnn_fashion_forward.1} parent=1 // pred_fallthru
      _
    // Predicated region
    $region38: #{cnn_fashion_forward.1} parent=1 // pred_check
      _
    $region39: #{cnn_fashion_forward.1} parent=1 // pred_check_branch
      %45 = sbr.rel (0) target = $region41
    $region40: #{cnn_fashion_forward.1} parent=1 // pred_region
      %46 = dma.done [#allocation5], 20480
    $region41: #{cnn_fashion_forward.1} parent=1 // pred_fallthru
      _
    %v47 = vld [vmem:[%s0] sm:$0xff]
    %v48 = vld [vmem:[%s0 + $0x8] sm:$0xff]
    %v49 = vld [vmem:[%s0 + $0x10] sm:$0xff]
    %v50 = vld [vmem:[%s0 + $0x20] sm:$0xff]
    %v51 = vld [vmem:[%s0 + $0x28] sm:$0xff]
    %v52 = vld [vmem:[%s0 + $0x30] sm:$0xff]
    %v53 = vld [vmem:[%s1] sm:$0xff]
    %v54 = vld [vmem:[%s1 + $0x8] sm:$0xff]
    %v55 = vld [vmem:[%s1 + $0x10] sm:$0xff]
    %v56 = vld [vmem:[%s1 + $0x18] sm:$0xff]
    %v57 = vld [vmem:[%s1 + $0x20] sm:$0xff]
    %v58 = vld [vmem:[%s1 + $0x28] sm:$0xff]
    %v59 = vld [vmem:[%s1 + $0x30] sm:$0xf]
    %v60 = vld [vmem:[%s1 + $0x38] sm:$0xf]
    %v61 = vld [vmem:[%s0 + $0x1] sm:$0xff]
    %v62 = vld [vmem:[%s0 + $0x9] sm:$0xff]
    %v63 = vld [vmem:[%s0 + $0x11] sm:$0xff]
    %v64 = vld [vmem:[%s0 + $0x21] sm:$0xff]
    %v65 = vld [vmem:[%s0 + $0x29] sm:$0xff]
    %v66 = vld [vmem:[%s0 + $0x31] sm:$0xff]
    %s67 = scalar_lea.vmem %s1, 64
    %v68 = vld [vmem:[%s67] sm:$0xff]
    %v69 = vld [vmem:[%s67 + $0x8] sm:$0xff]
    %v70 = vld [vmem:[%s67 + $0x10] sm:$0xff]
    %v71 = vld [vmem:[%s67 + $0x18] sm:$0xff]
    %v72 = vld [vmem:[%s67 + $0x20] sm:$0xff]
    %v73 = vld [vmem:[%s67 + $0x28] sm:$0xff]
    %v74 = vld [vmem:[%s67 + $0x30] sm:$0xf]
    %v75 = vld [vmem:[%s67 + $0x38] sm:$0xf]
    %vm76 = vcmask 228352
    %v78 = vsel %vm76, %v61, 0
    %v81 = vsel %vm76, %v62, 0
    %v84 = vsel %vm76, %v63, 0
    %v87 = vsel %vm76, %v64, 0
    %v90 = vsel %vm76, %v65, 0
    %v93 = vsel %vm76, %v66, 0
    %vm95 = vcmask 1043456
    %v97 = vsel %vm95, %v74, 0
    %v100 = vsel %vm95, %v75, 0
    %102 = vmatprep.subr.mxu0 %v69
    %103 = vmatpush1.msra.mxu0 %v68
    %104 = vmatprep.subr.mxu0 %v71
    %105 = vmatpush1.msra.mxu0 %v70
    %106 = vmatprep.subr.mxu0 %v73
    %107 = vmatpush1.msra.mxu0 %v72
    %108 = vmatprep.subr.mxu0 %v100
    %109 = vmatpush1.msra.mxu0 %v97
    %110 = vmatprep.subr.mxu0 0.0
    %111 = vmatpush1.msra.mxu0 0.0
    %112 = vmatprep.subr.mxu0 0.0
    %113 = vmatpush1.msra.mxu0 0.0
    %114 = vmatprep.subr.mxu0 0.0
    %115 = vmatpush1.msra.mxu0 0.0
    %116 = vmatprep.subr.mxu0 0.0
    %117 = vmatpush1.msra.mxu0 0.0
    %118 = vmatprep.subr.mxu0 0.0
    %119 = vmatpush1.msra.mxu0 0.0
    %120 = vmatprep.subr.mxu0 0.0
    %121 = vmatpush1.msra.mxu0 0.0
    %122 = vmatprep.subr.mxu0 0.0
    %123 = vmatpush1.msra.mxu0 0.0
    %124 = vmatprep.subr.mxu0 0.0
    %125 = vmatpush1.msra.mxu0 0.0
    %126 = vmatprep.subr.mxu0 0.0
    %127 = vmatpush1.msra.mxu0 0.0
    %128 = vmatprep.subr.mxu0 0.0
    %129 = vmatpush1.msra.mxu0 0.0
    %130 = vmatprep.subr.mxu0 0.0
    %131 = vmatpush1.msra.mxu0 0.0
    %132 = vmatprep.subr.mxu0 0.0
    %133 = vmatpush1.msra.mxu0 0.0
    %134 = vmatprep.subr.mxu0 0.0
    %135 = vmatpush1.msra.mxu0 0.0
    %136 = vmatprep.subr.mxu0 0.0
    %137 = vmatpush1.msra.mxu0 0.0
    %138 = vmatprep.subr.mxu0 0.0
    %139 = vmatpush1.msra.mxu0 0.0
    %140 = vmatprep.subr.mxu0 0.0
    %141 = vmatpush1.msra.mxu0 0.0
    %142 = vmatprep.subr.mxu0 0.0
    %143 = vmatpush1.msra.mxu0 0.0
    %144 = vmatprep.subr.mxu0 0.0
    %145 = vmatpush1.msra.mxu0 0.0
    %146 = vmatprep.subr.mxu0 0.0
    %147 = vmatpush1.msra.mxu0 0.0
    %148 = vmatprep.subr.mxu0 0.0
    %149 = vmatpush1.msra.mxu0 0.0
    %150 = vmatprep.subr.mxu0 0.0
    %151 = vmatpush1.msra.mxu0 0.0
    %152 = vmatprep.subr.mxu0 0.0
    %153 = vmatpush1.msra.mxu0 0.0
    %154 = vmatprep.subr.mxu0 0.0
    %155 = vmatpush1.msra.mxu0 0.0
    %156 = vmatprep.subr.mxu0 0.0
    %157 = vmatpush1.msra.mxu0 0.0
    %158 = vmatprep.subr.mxu0 0.0
    %159 = vmatpush1.msra.mxu0 0.0
    %160 = vmatprep.subr.mxu0 0.0
    %161 = vmatpush1.msra.mxu0 0.0
    %162 = vmatprep.subr.mxu0 0.0
    %163 = vmatpush1.msra.mxu0 0.0
    %164 = vmatprep.subr.mxu0 0.0
    %165 = vmatpush1.msra.mxu0 0.0
    %166 = vmatprep.mubr.f32.mxu0 0.0
    %167 = vmatmul.mubr.f32.gmra.mrb[0].mxu0 %v78
    %v168 = vpop.f32.mrb[0].mxu0
    %v169 = vadd.f32 0.0, %v168
    %v170 = vpop.f32.mrb[0].mxu0
    %v171 = vadd.f32 0.0, %v170
    %172 = vmatprep.mubr.f32.mxu0 0.0
    %173 = vmatmul.mubr.f32.gmra.mrb[0].mxu0 %v81
    %v174 = vpop.f32.mrb[0].mxu0
    %v175 = vadd.f32 0.0, %v174
    %v176 = vpop.f32.mrb[0].mxu0
    %v177 = vadd.f32 0.0, %v176
    %178 = vmatprep.mubr.f32.mxu0 0.0
    %179 = vmatmul.mubr.f32.gmra.mrb[0].mxu0 %v84
    %v180 = vpop.f32.mrb[0].mxu0
    %v181 = vadd.f32 0.0, %v180
    %v182 = vpop.f32.mrb[0].mxu0
    %v183 = vadd.f32 0.0, %v182
    %184 = vmatprep.mubr.f32.mxu0 0.0
    %185 = vmatmul.mubr.f32.gmra.mrb[0].mxu0 %v87
    %v186 = vpop.f32.mrb[0].mxu0
    %v187 = vadd.f32 0.0, %v186
    %v188 = vpop.f32.mrb[0].mxu0
    %v189 = vadd.f32 0.0, %v188
    %190 = vmatprep.mubr.f32.mxu0 0.0
    %191 = vmatmul.mubr.f32.gmra.mrb[0].mxu0 %v90
    %v192 = vpop.f32.mrb[0].mxu0
    %v193 = vadd.f32 0.0, %v192
    %v194 = vpop.f32.mrb[0].mxu0
    %v195 = vadd.f32 0.0, %v194
    %196 = vmatprep.mubr.f32.mxu0 0.0
    %197 = vmatmul.mubr.f32.gmra.mrb[0].mxu0 %v93
    %v198 = vpop.f32.mrb[0].mxu0
    %v199 = vadd.f32 0.0, %v198
    %v200 = vpop.f32.mrb[0].mxu0
    %v201 = vadd.f32 0.0, %v200
    %202 = vdwg.mxu0
    %v204 = vsel %vm76, %v47, 0
    %v207 = vsel %vm76, %v48, 0
    %v210 = vsel %vm76, %v49, 0
    %v213 = vsel %vm76, %v50, 0
    %v216 = vsel %vm76, %v51, 0
    %v219 = vsel %vm76, %v52, 0
    %v222 = vsel %vm95, %v59, 0
    %v225 = vsel %vm95, %v60, 0
    %227 = vmatprep.subr.mxu0 %v54
    %228 = vmatpush1.msra.mxu0 %v53
    %229 = vmatprep.subr.mxu0 %v56
    %230 = vmatpush1.msra.mxu0 %v55
    %231 = vmatprep.subr.mxu0 %v58
    %232 = vmatpush1.msra.mxu0 %v57
    %233 = vmatprep.subr.mxu0 %v225
    %234 = vmatpush1.msra.mxu0 %v222
    %235 = vmatprep.subr.mxu0 0.0
    %236 = vmatpush1.msra.mxu0 0.0
    %237 = vmatprep.subr.mxu0 0.0
    %238 = vmatpush1.msra.mxu0 0.0
    %239 = vmatprep.subr.mxu0 0.0
    %240 = vmatpush1.msra.mxu0 0.0
    %241 = vmatprep.subr.mxu0 0.0
    %242 = vmatpush1.msra.mxu0 0.0
    %243 = vmatprep.subr.mxu0 0.0
    %244 = vmatpush1.msra.mxu0 0.0
    %245 = vmatprep.subr.mxu0 0.0
    %246 = vmatpush1.msra.mxu0 0.0
    %247 = vmatprep.subr.mxu0 0.0
    %248 = vmatpush1.msra.mxu0 0.0
    %249 = vmatprep.subr.mxu0 0.0
    %250 = vmatpush1.msra.mxu0 0.0
    %251 = vmatprep.subr.mxu0 0.0
    %252 = vmatpush1.msra.mxu0 0.0
    %253 = vmatprep.subr.mxu0 0.0
    %254 = vmatpush1.msra.mxu0 0.0
    %255 = vmatprep.subr.mxu0 0.0
    %256 = vmatpush1.msra.mxu0 0.0
    %257 = vmatprep.subr.mxu0 0.0
    %258 = vmatpush1.msra.mxu0 0.0
    %259 = vmatprep.subr.mxu0 0.0
    %260 = vmatpush1.msra.mxu0 0.0
    %261 = vmatprep.subr.mxu0 0.0
    %262 = vmatpush1.msra.mxu0 0.0
    %263 = vmatprep.subr.mxu0 0.0
    %264 = vmatpush1.msra.mxu0 0.0
    %265 = vmatprep.subr.mxu0 0.0
    %266 = vmatpush1.msra.mxu0 0.0
    %267 = vmatprep.subr.mxu0 0.0
    %268 = vmatpush1.msra.mxu0 0.0
    %269 = vmatprep.subr.mxu0 0.0
    %270 = vmatpush1.msra.mxu0 0.0
    %271 = vmatprep.subr.mxu0 0.0
    %272 = vmatpush1.msra.mxu0 0.0
    %273 = vmatprep.subr.mxu0 0.0
    %274 = vmatpush1.msra.mxu0 0.0
    %275 = vmatprep.subr.mxu0 0.0
    %276 = vmatpush1.msra.mxu0 0.0
    %277 = vmatprep.subr.mxu0 0.0
    %278 = vmatpush1.msra.mxu0 0.0
    %279 = vmatprep.subr.mxu0 0.0
    %280 = vmatpush1.msra.mxu0 0.0
    %281 = vmatprep.subr.mxu0 0.0
    %282 = vmatpush1.msra.mxu0 0.0
    %283 = vmatprep.subr.mxu0 0.0
    %284 = vmatpush1.msra.mxu0 0.0
    %285 = vmatprep.subr.mxu0 0.0
    %286 = vmatpush1.msra.mxu0 0.0
    %287 = vmatprep.subr.mxu0 0.0
    %288 = vmatpush1.msra.mxu0 0.0
    %289 = vmatprep.subr.mxu0 0.0
    %290 = vmatpush1.msra.mxu0 0.0
    %291 = vmatprep.mubr.f32.mxu0 0.0
    %292 = vmatmul.mubr.f32.gmra.mrb[0].mxu0 %v204
    %v293 = vpop.f32.mrb[0].mxu0
    %v294 = vadd.f32 %v169, %v293
    %v295 = vpop.f32.mrb[0].mxu0
    %v296 = vadd.f32 %v171, %v295
    %297 = vmatprep.mubr.f32.mxu0 0.0
    %298 = vmatmul.mubr.f32.gmra.mrb[0].mxu0 %v207
    %v299 = vpop.f32.mrb[0].mxu0
    %v300 = vadd.f32 %v175, %v299
    %v301 = vpop.f32.mrb[0].mxu0
    %v302 = vadd.f32 %v177, %v301
    %303 = vmatprep.mubr.f32.mxu0 0.0
    %304 = vmatmul.mubr.f32.gmra.mrb[0].mxu0 %v210
    %v305 = vpop.f32.mrb[0].mxu0
    %v306 = vadd.f32 %v181, %v305
    %v307 = vpop.f32.mrb[0].mxu0
    %v308 = vadd.f32 %v183, %v307
    %309 = vmatprep.mubr.f32.mxu0 0.0
    %310 = vmatmul.mubr.f32.gmra.mrb[0].mxu0 %v213
    %v311 = vpop.f32.mrb[0].mxu0
    %v312 = vadd.f32 %v187, %v311
    %v313 = vpop.f32.mrb[0].mxu0
    %v314 = vadd.f32 %v189, %v313
    %315 = vmatprep.mubr.f32.mxu0 0.0
    %316 = vmatmul.mubr.f32.gmra.mrb[0].mxu0 %v216
    %v317 = vpop.f32.mrb[0].mxu0
    %v318 = vadd.f32 %v193, %v317
    %v319 = vpop.f32.mrb[0].mxu0
    %v320 = vadd.f32 %v195, %v319
    %321 = vmatprep.mubr.f32.mxu0 0.0
    %322 = vmatmul.mubr.f32.gmra.mrb[0].mxu0 %v219
    %v323 = vpop.f32.mrb[0].mxu0
    %v324 = vadd.f32 %v199, %v323
    %v325 = vpop.f32.mrb[0].mxu0
    %v326 = vadd.f32 %v201, %v325
    %327 = vdwg.mxu0
    %v328 = vld [vmem:[%s0 + $0x2] sm:$0xff]
    %v329 = vld [vmem:[%s0 + $0xa] sm:$0xff]
    %v330 = vld [vmem:[%s0 + $0x12] sm:$0xff]
    %v331 = vld [vmem:[%s0 + $0x22] sm:$0xff]
    %v332 = vld [vmem:[%s0 + $0x2a] sm:$0xff]
    %v333 = vld [vmem:[%s0 + $0x32] sm:$0xff]
    %s334 = scalar_lea.vmem %s1, 128
    %v335 = vld [vmem:[%s334] sm:$0xff]
    %v336 = vld [vmem:[%s334 + $0x8] sm:$0xff]
    %v337 = vld [vmem:[%s334 + $0x10] sm:$0xff]
    %v338 = vld [vmem:[%s334 + $0x18] sm:$0xff]
    %v339 = vld [vmem:[%s334 + $0x20] sm:$0xff]
    %v340 = vld [vmem:[%s334 + $0x28] sm:$0xff]
    %v341 = vld [vmem:[%s334 + $0x30] sm:$0xf]
    %v342 = vld [vmem:[%s334 + $0x38] sm:$0xf]
    %v344 = vsel %vm76, %v328, 0
    %v347 = vsel %vm76, %v329, 0
    %v350 = vsel %vm76, %v330, 0
    %v353 = vsel %vm76, %v331, 0
    %v356 = vsel %vm76, %v332, 0
    %v359 = vsel %vm76, %v333, 0
    %v362 = vsel %vm95, %v341, 0
    %v365 = vsel %vm95, %v342, 0
    %367 = vmatprep.subr.mxu0 %v336
    %368 = vmatpush1.msra.mxu0 %v335
    %369 = vmatprep.subr.mxu0 %v338
    %370 = vmatpush1.msra.mxu0 %v337
    %371 = vmatprep.subr.mxu0 %v340
    %372 = vmatpush1.msra.mxu0 %v339
    %373 = vmatprep.subr.mxu0 %v365
    %374 = vmatpush1.msra.mxu0 %v362
    %375 = vmatprep.subr.mxu0 0.0
    %376 = vmatpush1.msra.mxu0 0.0
    %377 = vmatprep.subr.mxu0 0.0
    %378 = vmatpush1.msra.mxu0 0.0
    %379 = vmatprep.subr.mxu0 0.0
    %380 = vmatpush1.msra.mxu0 0.0
    %381 = vmatprep.subr.mxu0 0.0
    %382 = vmatpush1.msra.mxu0 0.0
    %383 = vmatprep.subr.mxu0 0.0
    %384 = vmatpush1.msra.mxu0 0.0
    %385 = vmatprep.subr.mxu0 0.0
    %386 = vmatpush1.msra.mxu0 0.0
    %387 = vmatprep.subr.mxu0 0.0
    %388 = vmatpush1.msra.mxu0 0.0
    %389 = vmatprep.subr.mxu0 0.0
    %390 = vmatpush1.msra.mxu0 0.0
    %391 = vmatprep.subr.mxu0 0.0
    %392 = vmatpush1.msra.mxu0 0.0
    %393 = vmatprep.subr.mxu0 0.0
    %394 = vmatpush1.msra.mxu0 0.0
    %395 = vmatprep.subr.mxu0 0.0
    %396 = vmatpush1.msra.mxu0 0.0
    %397 = vmatprep.subr.mxu0 0.0
    %398 = vmatpush1.msra.mxu0 0.0
    %399 = vmatprep.subr.mxu0 0.0
    %400 = vmatpush1.msra.mxu0 0.0
    %401 = vmatprep.subr.mxu0 0.0
    %402 = vmatpush1.msra.mxu0 0.0
    %403 = vmatprep.subr.mxu0 0.0
    %404 = vmatpush1.msra.mxu0 0.0
    %405 = vmatprep.subr.mxu0 0.0
    %406 = vmatpush1.msra.mxu0 0.0
    %407 = vmatprep.subr.mxu0 0.0
    %408 = vmatpush1.msra.mxu0 0.0
    %409 = vmatprep.subr.mxu0 0.0
    %410 = vmatpush1.msra.mxu0 0.0
    %411 = vmatprep.subr.mxu0 0.0
    %412 = vmatpush1.msra.mxu0 0.0
    %413 = vmatprep.subr.mxu0 0.0
    %414 = vmatpush1.msra.mxu0 0.0
    %415 = vmatprep.subr.mxu0 0.0
    %416 = vmatpush1.msra.mxu0 0.0
    %417 = vmatprep.subr.mxu0 0.0
    %418 = vmatpush1.msra.mxu0 0.0
    %419 = vmatprep.subr.mxu0 0.0
    %420 = vmatpush1.msra.mxu0 0.0
    %421 = vmatprep.subr.mxu0 0.0
    %422 = vmatpush1.msra.mxu0 0.0
    %423 = vmatprep.subr.mxu0 0.0
    %424 = vmatpush1.msra.mxu0 0.0
    %425 = vmatprep.subr.mxu0 0.0
    %426 = vmatpush1.msra.mxu0 0.0
    %427 = vmatprep.subr.mxu0 0.0
    %428 = vmatpush1.msra.mxu0 0.0
    %429 = vmatprep.subr.mxu0 0.0
    %430 = vmatpush1.msra.mxu0 0.0
    %431 = vmatprep.mubr.f32.mxu0 0.0
    %432 = vmatmul.mubr.f32.gmra.mrb[0].mxu0 %v344
    %v433 = vpop.f32.mrb[0].mxu0
    %v434 = vadd.f32 0.0, %v433
    %v435 = vpop.f32.mrb[0].mxu0
    %v436 = vadd.f32 0.0, %v435
    %437 = vmatprep.mubr.f32.mxu0 0.0
    %438 = vmatmul.mubr.f32.gmra.mrb[0].mxu0 %v347
    %v439 = vpop.f32.mrb[0].mxu0
    %v440 = vadd.f32 0.0, %v439
    %v441 = vpop.f32.mrb[0].mxu0
    %v442 = vadd.f32 0.0, %v441
    %443 = vmatprep.mubr.f32.mxu0 0.0
    %444 = vmatmul.mubr.f32.gmra.mrb[0].mxu0 %v350
    %v445 = vpop.f32.mrb[0].mxu0
    %v446 = vadd.f32 0.0, %v445
    %v447 = vpop.f32.mrb[0].mxu0
    %v448 = vadd.f32 0.0, %v447
    %449 = vmatprep.mubr.f32.mxu0 0.0
    %450 = vmatmul.mubr.f32.gmra.mrb[0].mxu0 %v353
    %v451 = vpop.f32.mrb[0].mxu0
    %v452 = vadd.f32 0.0, %v451
    %v453 = vpop.f32.mrb[0].mxu0
    %v454 = vadd.f32 0.0, %v453
    %455 = vmatprep.mubr.f32.mxu0 0.0
    %456 = vmatmul.mubr.f32.gmra.mrb[0].mxu0 %v356
    %v457 = vpop.f32.mrb[0].mxu0
    %v458 = vadd.f32 0.0, %v457
    %v459 = vpop.f32.mrb[0].mxu0
    %v460 = vadd.f32 0.0, %v459
    %461 = vmatprep.mubr.f32.mxu0 0.0
    %462 = vmatmul.mubr.f32.gmra.mrb[0].mxu0 %v359
    %v463 = vpop.f32.mrb[0].mxu0
    %v464 = vadd.f32 0.0, %v463
    %v465 = vpop.f32.mrb[0].mxu0
    %v466 = vadd.f32 0.0, %v465
    %467 = vdwg.mxu0
    %v468 = vadd.f32 %v294, %v434
    %v469 = vadd.f32 %v296, %v436
    %v470 = vadd.f32 %v300, %v440
    %v471 = vadd.f32 %v302, %v442
    %v472 = vadd.f32 %v306, %v446
    %v473 = vadd.f32 %v308, %v448
    %v474 = vadd.f32 %v312, %v452
    %v475 = vadd.f32 %v314, %v454
    %v476 = vadd.f32 %v318, %v458
    %v477 = vadd.f32 %v320, %v460
    %v478 = vadd.f32 %v324, %v464
    %v479 = vadd.f32 %v326, %v466
    %v480 = vld [vmem:[%s0 + $0x3] sm:$0xff]
    %v481 = vld [vmem:[%s0 + $0xb] sm:$0xff]
    %v482 = vld [vmem:[%s0 + $0x13] sm:$0xff]
    %v483 = vld [vmem:[%s0 + $0x23] sm:$0xff]
    %v484 = vld [vmem:[%s0 + $0x2b] sm:$0xff]
    %v485 = vld [vmem:[%s0 + $0x33] sm:$0xff]
    %s486 = scalar_lea.vmem %s1, 192
    %v487 = vld [vmem:[%s486] sm:$0xff]
    %v488 = vld [vmem:[%s486 + $0x8] sm:$0xff]
    %v489 = vld [vmem:[%s486 + $0x10] sm:$0xff]
    %v490 = vld [vmem:[%s486 + $0x18] sm:$0xff]
    %v491 = vld [vmem:[%s486 + $0x20] sm:$0xff]
    %v492 = vld [vmem:[%s486 + $0x28] sm:$0xff]
    %v493 = vld [vmem:[%s486 + $0x30] sm:$0xf]
    %v494 = vld [vmem:[%s486 + $0x38] sm:$0xf]
    %v496 = vsel %vm76, %v480, 0
    %v499 = vsel %vm76, %v481, 0
    %v502 = vsel %vm76, %v482, 0
    %v505 = vsel %vm76, %v483, 0
    %v508 = vsel %vm76, %v484, 0
    %v511 = vsel %vm76, %v485, 0
    %v514 = vsel %vm95, %v493, 0
    %v517 = vsel %vm95, %v494, 0
    %519 = vmatprep.subr.mxu0 %v488
    %520 = vmatpush1.msra.mxu0 %v487
    %521 = vmatprep.subr.mxu0 %v490
    %522 = vmatpush1.msra.mxu0 %v489
    %523 = vmatprep.subr.mxu0 %v492
    %524 = vmatpush1.msra.mxu0 %v491
    %525 = vmatprep.subr.mxu0 %v517
    %526 = vmatpush1.msra.mxu0 %v514
    %527 = vmatprep.subr.mxu0 0.0
    %528 = vmatpush1.msra.mxu0 0.0
    %529 = vmatprep.subr.mxu0 0.0
    %530 = vmatpush1.msra.mxu0 0.0
    %531 = vmatprep.subr.mxu0 0.0
    %532 = vmatpush1.msra.mxu0 0.0
    %533 = vmatprep.subr.mxu0 0.0
    %534 = vmatpush1.msra.mxu0 0.0
    %535 = vmatprep.subr.mxu0 0.0
    %536 = vmatpush1.msra.mxu0 0.0
    %537 = vmatprep.subr.mxu0 0.0
    %538 = vmatpush1.msra.mxu0 0.0
    %539 = vmatprep.subr.mxu0 0.0
    %540 = vmatpush1.msra.mxu0 0.0
    %541 = vmatprep.subr.mxu0 0.0
    %542 = vmatpush1.msra.mxu0 0.0
    %543 = vmatprep.subr.mxu0 0.0
    %544 = vmatpush1.msra.mxu0 0.0
    %545 = vmatprep.subr.mxu0 0.0
    %546 = vmatpush1.msra.mxu0 0.0
    %547 = vmatprep.subr.mxu0 0.0
    %548 = vmatpush1.msra.mxu0 0.0
    %549 = vmatprep.subr.mxu0 0.0
    %550 = vmatpush1.msra.mxu0 0.0
    %551 = vmatprep.subr.mxu0 0.0
    %552 = vmatpush1.msra.mxu0 0.0
    %553 = vmatprep.subr.mxu0 0.0
    %554 = vmatpush1.msra.mxu0 0.0
    %555 = vmatprep.subr.mxu0 0.0
    %556 = vmatpush1.msra.mxu0 0.0
    %557 = vmatprep.subr.mxu0 0.0
    %558 = vmatpush1.msra.mxu0 0.0
    %559 = vmatprep.subr.mxu0 0.0
    %560 = vmatpush1.msra.mxu0 0.0
    %561 = vmatprep.subr.mxu0 0.0
    %562 = vmatpush1.msra.mxu0 0.0
    %563 = vmatprep.subr.mxu0 0.0
    %564 = vmatpush1.msra.mxu0 0.0
    %565 = vmatprep.subr.mxu0 0.0
    %566 = vmatpush1.msra.mxu0 0.0
    %567 = vmatprep.subr.mxu0 0.0
    %568 = vmatpush1.msra.mxu0 0.0
    %569 = vmatprep.subr.mxu0 0.0
    %570 = vmatpush1.msra.mxu0 0.0
    %571 = vmatprep.subr.mxu0 0.0
    %572 = vmatpush1.msra.mxu0 0.0
    %573 = vmatprep.subr.mxu0 0.0
    %574 = vmatpush1.msra.mxu0 0.0
    %575 = vmatprep.subr.mxu0 0.0
    %576 = vmatpush1.msra.mxu0 0.0
    %577 = vmatprep.subr.mxu0 0.0
    %578 = vmatpush1.msra.mxu0 0.0
    %579 = vmatprep.subr.mxu0 0.0
    %580 = vmatpush1.msra.mxu0 0.0
    %581 = vmatprep.subr.mxu0 0.0
    %582 = vmatpush1.msra.mxu0 0.0
    %583 = vmatprep.mubr.f32.mxu0 0.0
    %584 = vmatmul.mubr.f32.gmra.mrb[0].mxu0 %v496
    %v585 = vpop.f32.mrb[0].mxu0
    %v586 = vadd.f32 0.0, %v585
    %v587 = vpop.f32.mrb[0].mxu0
    %v588 = vadd.f32 0.0, %v587
    %589 = vmatprep.mubr.f32.mxu0 0.0
    %590 = vmatmul.mubr.f32.gmra.mrb[0].mxu0 %v499
    %v591 = vpop.f32.mrb[0].mxu0
    %v592 = vadd.f32 0.0, %v591
    %v593 = vpop.f32.mrb[0].mxu0
    %v594 = vadd.f32 0.0, %v593
    %595 = vmatprep.mubr.f32.mxu0 0.0
    %596 = vmatmul.mubr.f32.gmra.mrb[0].mxu0 %v502
    %v597 = vpop.f32.mrb[0].mxu0
    %v598 = vadd.f32 0.0, %v597
    %v599 = vpop.f32.mrb[0].mxu0
    %v600 = vadd.f32 0.0, %v599
    %601 = vmatprep.mubr.f32.mxu0 0.0
    %602 = vmatmul.mubr.f32.gmra.mrb[0].mxu0 %v505
    %v603 = vpop.f32.mrb[0].mxu0
    %v604 = vadd.f32 0.0, %v603
    %v605 = vpop.f32.mrb[0].mxu0
    %v606 = vadd.f32 0.0, %v605
    %607 = vmatprep.mubr.f32.mxu0 0.0
    %608 = vmatmul.mubr.f32.gmra.mrb[0].mxu0 %v508
    %v609 = vpop.f32.mrb[0].mxu0
    %v610 = vadd.f32 0.0, %v609
    %v611 = vpop.f32.mrb[0].mxu0
    %v612 = vadd.f32 0.0, %v611
    %613 = vmatprep.mubr.f32.mxu0 0.0
    %614 = vmatmul.mubr.f32.gmra.mrb[0].mxu0 %v511
    %v615 = vpop.f32.mrb[0].mxu0
    %v616 = vadd.f32 0.0, %v615
    %v617 = vpop.f32.mrb[0].mxu0
    %v618 = vadd.f32 0.0, %v617
    %619 = vdwg.mxu0
    %v620 = vadd.f32 %v468, %v586
    %v621 = vadd.f32 %v469, %v588
    %v622 = vadd.f32 %v470, %v592
    %v623 = vadd.f32 %v471, %v594
    %v624 = vadd.f32 %v472, %v598
    %v625 = vadd.f32 %v473, %v600
    %v626 = vadd.f32 %v474, %v604
    %v627 = vadd.f32 %v475, %v606
    %v628 = vadd.f32 %v476, %v610
    %v629 = vadd.f32 %v477, %v612
    %v630 = vadd.f32 %v478, %v616
    %v631 = vadd.f32 %v479, %v618
    %v632 = vld [vmem:[%s0 + $0x4] sm:$0xff]
    %v633 = vld [vmem:[%s0 + $0xc] sm:$0xff]
    %v634 = vld [vmem:[%s0 + $0x14] sm:$0xff]
    %v635 = vld [vmem:[%s0 + $0x24] sm:$0xff]
    %v636 = vld [vmem:[%s0 + $0x2c] sm:$0xff]
    %v637 = vld [vmem:[%s0 + $0x34] sm:$0xff]
    %s638 = scalar_lea.vmem %s1, 256
    %v639 = vld [vmem:[%s638] sm:$0xff]
    %v640 = vld [vmem:[%s638 + $0x8] sm:$0xff]
    %v641 = vld [vmem:[%s638 + $0x10] sm:$0xff]
    %v642 = vld [vmem:[%s638 + $0x18] sm:$0xff]
    %v643 = vld [vmem:[%s638 + $0x20] sm:$0xff]
    %v644 = vld [vmem:[%s638 + $0x28] sm:$0xff]
    %v645 = vld [vmem:[%s638 + $0x30] sm:$0xf]
    %v646 = vld [vmem:[%s638 + $0x38] sm:$0xf]
    %v648 = vsel %vm76, %v632, 0
    %v651 = vsel %vm76, %v633, 0
    %v654 = vsel %vm76, %v634, 0
    %v657 = vsel %vm76, %v635, 0
    %v660 = vsel %vm76, %v636, 0
    %v663 = vsel %vm76, %v637, 0
    %v666 = vsel %vm95, %v645, 0
    %v669 = vsel %vm95, %v646, 0
    %671 = vmatprep.subr.mxu0 %v640
    %672 = vmatpush1.msra.mxu0 %v639
    %673 = vmatprep.subr.mxu0 %v642
    %674 = vmatpush1.msra.mxu0 %v641
    %675 = vmatprep.subr.mxu0 %v644
    %676 = vmatpush1.msra.mxu0 %v643
    %677 = vmatprep.subr.mxu0 %v669
    %678 = vmatpush1.msra.mxu0 %v666
    %679 = vmatprep.subr.mxu0 0.0
    %680 = vmatpush1.msra.mxu0 0.0
    %681 = vmatprep.subr.mxu0 0.0
    %682 = vmatpush1.msra.mxu0 0.0
    %683 = vmatprep.subr.mxu0 0.0
    %684 = vmatpush1.msra.mxu0 0.0
    %685 = vmatprep.subr.mxu0 0.0
    %686 = vmatpush1.msra.mxu0 0.0
    %687 = vmatprep.subr.mxu0 0.0
    %688 = vmatpush1.msra.mxu0 0.0
    %689 = vmatprep.subr.mxu0 0.0
    %690 = vmatpush1.msra.mxu0 0.0
    %691 = vmatprep.subr.mxu0 0.0
    %692 = vmatpush1.msra.mxu0 0.0
    %693 = vmatprep.subr.mxu0 0.0
    %694 = vmatpush1.msra.mxu0 0.0
    %695 = vmatprep.subr.mxu0 0.0
    %696 = vmatpush1.msra.mxu0 0.0
    %697 = vmatprep.subr.mxu0 0.0
    %698 = vmatpush1.msra.mxu0 0.0
    %699 = vmatprep.subr.mxu0 0.0
    %700 = vmatpush1.msra.mxu0 0.0
    %701 = vmatprep.subr.mxu0 0.0
    %702 = vmatpush1.msra.mxu0 0.0
    %703 = vmatprep.subr.mxu0 0.0
    %704 = vmatpush1.msra.mxu0 0.0
    %705 = vmatprep.subr.mxu0 0.0
    %706 = vmatpush1.msra.mxu0 0.0
    %707 = vmatprep.subr.mxu0 0.0
    %708 = vmatpush1.msra.mxu0 0.0
    %709 = vmatprep.subr.mxu0 0.0
    %710 = vmatpush1.msra.mxu0 0.0
    %711 = vmatprep.subr.mxu0 0.0
    %712 = vmatpush1.msra.mxu0 0.0
    %713 = vmatprep.subr.mxu0 0.0
    %714 = vmatpush1.msra.mxu0 0.0
    %715 = vmatprep.subr.mxu0 0.0
    %716 = vmatpush1.msra.mxu0 0.0
    %717 = vmatprep.subr.mxu0 0.0
    %718 = vmatpush1.msra.mxu0 0.0
    %719 = vmatprep.subr.mxu0 0.0
    %720 = vmatpush1.msra.mxu0 0.0
    %721 = vmatprep.subr.mxu0 0.0
    %722 = vmatpush1.msra.mxu0 0.0
    %723 = vmatprep.subr.mxu0 0.0
    %724 = vmatpush1.msra.mxu0 0.0
    %725 = vmatprep.subr.mxu0 0.0
    %726 = vmatpush1.msra.mxu0 0.0
    %727 = vmatprep.subr.mxu0 0.0
    %728 = vmatpush1.msra.mxu0 0.0
    %729 = vmatprep.subr.mxu0 0.0
    %730 = vmatpush1.msra.mxu0 0.0
    %731 = vmatprep.subr.mxu0 0.0
    %732 = vmatpush1.msra.mxu0 0.0
    %733 = vmatprep.subr.mxu0 0.0
    %734 = vmatpush1.msra.mxu0 0.0
    %735 = vmatprep.mubr.f32.mxu0 0.0
    %736 = vmatmul.mubr.f32.gmra.mrb[0].mxu0 %v648
    %v737 = vpop.f32.mrb[0].mxu0
    %v738 = vadd.f32 0.0, %v737
    %v739 = vpop.f32.mrb[0].mxu0
    %v740 = vadd.f32 0.0, %v739
    %741 = vmatprep.mubr.f32.mxu0 0.0
    %742 = vmatmul.mubr.f32.gmra.mrb[0].mxu0 %v651
    %v743 = vpop.f32.mrb[0].mxu0
    %v744 = vadd.f32 0.0, %v743
    %v745 = vpop.f32.mrb[0].mxu0
    %v746 = vadd.f32 0.0, %v745
    %747 = vmatprep.mubr.f32.mxu0 0.0
    %748 = vmatmul.mubr.f32.gmra.mrb[0].mxu0 %v654
    %v749 = vpop.f32.mrb[0].mxu0
    %v750 = vadd.f32 0.0, %v749
    %v751 = vpop.f32.mrb[0].mxu0
    %v752 = vadd.f32 0.0, %v751
    %753 = vmatprep.mubr.f32.mxu0 0.0
    %754 = vmatmul.mubr.f32.gmra.mrb[0].mxu0 %v657
    %v755 = vpop.f32.mrb[0].mxu0
    %v756 = vadd.f32 0.0, %v755
    %v757 = vpop.f32.mrb[0].mxu0
    %v758 = vadd.f32 0.0, %v757
    %759 = vmatprep.mubr.f32.mxu0 0.0
    %760 = vmatmul.mubr.f32.gmra.mrb[0].mxu0 %v660
    %v761 = vpop.f32.mrb[0].mxu0
    %v762 = vadd.f32 0.0, %v761
    %v763 = vpop.f32.mrb[0].mxu0
    %v764 = vadd.f32 0.0, %v763
    %765 = vmatprep.mubr.f32.mxu0 0.0
    %766 = vmatmul.mubr.f32.gmra.mrb[0].mxu0 %v663
    %v767 = vpop.f32.mrb[0].mxu0
    %v768 = vadd.f32 0.0, %v767
    %v769 = vpop.f32.mrb[0].mxu0
    %v770 = vadd.f32 0.0, %v769
    %771 = vdwg.mxu0
    %v772 = vadd.f32 %v620, %v738
    %v773 = vadd.f32 %v621, %v740
    %v774 = vadd.f32 %v622, %v744
    %v775 = vadd.f32 %v623, %v746
    %v776 = vadd.f32 %v624, %v750
    %v777 = vadd.f32 %v625, %v752
    %v778 = vadd.f32 %v626, %v756
    %v779 = vadd.f32 %v627, %v758
    %v780 = vadd.f32 %v628, %v762
    %v781 = vadd.f32 %v629, %v764
    %v782 = vadd.f32 %v630, %v768
    %v783 = vadd.f32 %v631, %v770
    %v784 = vld [vmem:[%s2] sm:$0x3]
    %v786 = vlaneseq
    %v787 = vshrl.u32 %v786, 7
    %v788 = vsub.s32 0, %v787
    %v789 = vrot.slane %v784, %v788
    %v790 = vlaneseq
    %v791 = vshrl.u32 %v790, 7
    %v792 = vsub.s32 1, %v791
    %v793 = vrot.slane %v784, %v792
    %v796 = vadd.f32 %v772, %v789
    %v797 = vadd.f32 %v773, %v793
    %v798 = vadd.f32 %v774, %v789
    %v799 = vadd.f32 %v775, %v793
    %v800 = vadd.f32 %v776, %v789
    %v801 = vadd.f32 %v777, %v793
    %v802 = vadd.f32 %v778, %v789
    %v803 = vadd.f32 %v779, %v793
    %v804 = vadd.f32 %v780, %v789
    %v805 = vadd.f32 %v781, %v793
    %v806 = vadd.f32 %v782, %v789
    %v807 = vadd.f32 %v783, %v793
    %v808 = vmax.f32 %v796, 0.0
    %v809 = vmax.f32 %v797, 0.0
    %v810 = vmax.f32 %v798, 0.0
    %v811 = vmax.f32 %v799, 0.0
    %v812 = vmax.f32 %v800, 0.0
    %v813 = vmax.f32 %v801, 0.0
    %v814 = vmax.f32 %v802, 0.0
    %v815 = vmax.f32 %v803, 0.0
    %v816 = vmax.f32 %v804, 0.0
    %v817 = vmax.f32 %v805, 0.0
    %v818 = vmax.f32 %v806, 0.0
    %v819 = vmax.f32 %v807, 0.0
    %v820 = vmax.f32 %v808, %v809
    %v821 = vmax.f32 %v810, %v811
    %v822 = vmax.f32 %v812, %v813
    %v823 = vmax.f32 %v814, %v815
    %v824 = vmax.f32 %v816, %v817
    %v825 = vmax.f32 %v818, %v819
    %826 = vst [vmem:[#allocation2] sm:$0xff] %v820
    %827 = vst [vmem:[#allocation2 + $0x8] sm:$0xff] %v821
    %828 = vst [vmem:[#allocation2 + $0x10] sm:$0xff] %v822
    %829 = vst [vmem:[#allocation2 + $0x18] sm:$0xff] %v823
    %830 = vst [vmem:[#allocation2 + $0x20] sm:$0xff] %v824
    %831 = vst [vmem:[#allocation2 + $0x28] sm:$0xff] %v825
    %v832 = vld [vmem:[#allocation2] ss:$2 sm:$0xff]
    %s833 = scalar_lea.vmem [#allocation2], 16
    %v834 = vld [vmem:[%s833] ss:$2 sm:$0xf]
    %s835 = scalar_lea.vmem [#allocation2], 24
    %v836 = vld [vmem:[%s835] ss:$2 sm:$0xff]
    %s837 = scalar_lea.vmem [#allocation2], 40
    %v838 = vld [vmem:[%s837] ss:$2 sm:$0xf]
    %s839 = scalar_lea.vmem [#allocation2], 1
    %v840 = vld [vmem:[%s839] ss:$2 sm:$0xff]
    %s841 = scalar_lea.vmem [#allocation2], 17
    %v842 = vld [vmem:[%s841] ss:$2 sm:$0xf]
    %s843 = scalar_lea.vmem [#allocation2], 25
    %v844 = vld [vmem:[%s843] ss:$2 sm:$0xff]
    %s845 = scalar_lea.vmem [#allocation2], 41
    %v846 = vld [vmem:[%s845] ss:$2 sm:$0xf]
    %v847 = vmax.f32 %v832, %v840
    %v848 = vmax.f32 %v834, %v842
    %v849 = vmax.f32 %v836, %v844
    %v850 = vmax.f32 %v838, %v846
    %v851 = vld [vmem:[#allocation4] sm:$0xff]
    %v852 = vld [vmem:[#allocation4 + $0x8] sm:$0xff]
    %v853 = vld [vmem:[#allocation4 + $0x10] sm:$0xff]
    %v854 = vld [vmem:[#allocation4 + $0x18] sm:$0xff]
    %v855 = vld [vmem:[#allocation4 + $0x20] sm:$0xff]
    %v856 = vld [vmem:[#allocation4 + $0x28] sm:$0xff]
    %v857 = vld [vmem:[#allocation4 + $0x30] sm:$0xff]
    %v858 = vld [vmem:[#allocation4 + $0x38] sm:$0xff]
    %v859 = vld [vmem:[#allocation4 + $0x40] sm:$0xff]
    %v860 = vld [vmem:[#allocation4 + $0x48] sm:$0xff]
    %v861 = vld [vmem:[#allocation4 + $0x50] sm:$0xff]
    %v862 = vld [vmem:[#allocation4 + $0x58] sm:$0xff]
    %v863 = vld [vmem:[#allocation4 + $0x60] sm:$0xff]
    %v864 = vld [vmem:[#allocation4 + $0x68] sm:$0xff]
    %v865 = vld [vmem:[#allocation4 + $0x70] sm:$0xff]
    %v866 = vld [vmem:[#allocation4 + $0x78] sm:$0xff]
    %v867 = vld [vmem:[#allocation4 + $0x80] sm:$0xff]
    %v868 = vld [vmem:[#allocation4 + $0x88] sm:$0xff]
    %v869 = vld [vmem:[#allocation4 + $0x90] sm:$0xff]
    %v870 = vld [vmem:[#allocation4 + $0x98] sm:$0xff]
    %v871 = vld [vmem:[#allocation4 + $0xa0] sm:$0xff]
    %v872 = vld [vmem:[#allocation4 + $0xa8] sm:$0xff]
    %v873 = vld [vmem:[#allocation4 + $0xb0] sm:$0xff]
    %v874 = vld [vmem:[#allocation4 + $0xb8] sm:$0xff]
    %v875 = vld [vmem:[#allocation4 + $0xc0] sm:$0xff]
    %v876 = vld [vmem:[#allocation4 + $0xc8] sm:$0xff]
    %v877 = vld [vmem:[#allocation4 + $0xd0] sm:$0xff]
    %v878 = vld [vmem:[#allocation4 + $0xd8] sm:$0xff]
    %v879 = vld [vmem:[#allocation4 + $0xe0] sm:$0xff]
    %v880 = vld [vmem:[#allocation4 + $0xe8] sm:$0xff]
    %v881 = vld [vmem:[#allocation4 + $0xf0] sm:$0xff]
    %v882 = vld [vmem:[#allocation4 + $0xf8] sm:$0xff]
    %vm887 = vcmask 1046528
    %v888 = vrot.slane %v847, 1
    %v889 = vrot.slane %v848, 1
    %v890 = vsel %vm887, %v888, %v889
    %v891 = vrot.slane %v849, 1
    %v892 = vrot.slane %v850, 1
    %v893 = vsel %vm887, %v891, %v892
    %s896 = scalar_lea.vmem [#allocation4], 256
    %v897 = vld [vmem:[%s896] sm:$0xff]
    %v898 = vld [vmem:[%s896 + $0x8] sm:$0xff]
    %v899 = vld [vmem:[%s896 + $0x10] sm:$0xff]
    %v900 = vld [vmem:[%s896 + $0x18] sm:$0xff]
    %v901 = vld [vmem:[%s896 + $0x20] sm:$0xff]
    %v902 = vld [vmem:[%s896 + $0x28] sm:$0xff]
    %v903 = vld [vmem:[%s896 + $0x30] sm:$0xff]
    %v904 = vld [vmem:[%s896 + $0x38] sm:$0xff]
    %v905 = vld [vmem:[%s896 + $0x40] sm:$0xff]
    %v906 = vld [vmem:[%s896 + $0x48] sm:$0xff]
    %v907 = vld [vmem:[%s896 + $0x50] sm:$0xff]
    %v908 = vld [vmem:[%s896 + $0x58] sm:$0xff]
    %v909 = vld [vmem:[%s896 + $0x60] sm:$0xff]
    %v910 = vld [vmem:[%s896 + $0x68] sm:$0xff]
    %v911 = vld [vmem:[%s896 + $0x70] sm:$0xff]
    %v912 = vld [vmem:[%s896 + $0x78] sm:$0xff]
    %v913 = vld [vmem:[%s896 + $0x80] sm:$0xff]
    %v914 = vld [vmem:[%s896 + $0x88] sm:$0xff]
    %v915 = vld [vmem:[%s896 + $0x90] sm:$0xff]
    %v916 = vld [vmem:[%s896 + $0x98] sm:$0xff]
    %v917 = vld [vmem:[%s896 + $0xa0] sm:$0xff]
    %v918 = vld [vmem:[%s896 + $0xa8] sm:$0xff]
    %v919 = vld [vmem:[%s896 + $0xb0] sm:$0xff]
    %v920 = vld [vmem:[%s896 + $0xb8] sm:$0xff]
    %v921 = vld [vmem:[%s896 + $0xc0] sm:$0xff]
    %v922 = vld [vmem:[%s896 + $0xc8] sm:$0xff]
    %v923 = vld [vmem:[%s896 + $0xd0] sm:$0xff]
    %v924 = vld [vmem:[%s896 + $0xd8] sm:$0xff]
    %v925 = vld [vmem:[%s896 + $0xe0] sm:$0xff]
    %v926 = vld [vmem:[%s896 + $0xe8] sm:$0xff]
    %v927 = vld [vmem:[%s896 + $0xf0] sm:$0xff]
    %v928 = vld [vmem:[%s896 + $0xf8] sm:$0xff]
    %929 = vmatprep.subr.mxu0 %v898
    %930 = vmatpush1.msra.mxu0 %v897
    %931 = vmatprep.subr.mxu0 %v900
    %932 = vmatpush1.msra.mxu0 %v899
    %933 = vmatprep.subr.mxu0 %v902
    %934 = vmatpush1.msra.mxu0 %v901
    %935 = vmatprep.subr.mxu0 %v904
    %936 = vmatpush1.msra.mxu0 %v903
    %937 = vmatprep.subr.mxu0 %v906
    %938 = vmatpush1.msra.mxu0 %v905
    %939 = vmatprep.subr.mxu0 %v908
    %940 = vmatpush1.msra.mxu0 %v907
    %941 = vmatprep.subr.mxu0 %v910
    %942 = vmatpush1.msra.mxu0 %v909
    %943 = vmatprep.subr.mxu0 %v912
    %944 = vmatpush1.msra.mxu0 %v911
    %945 = vmatprep.subr.mxu0 %v914
    %946 = vmatpush1.msra.mxu0 %v913
    %947 = vmatprep.subr.mxu0 %v916
    %948 = vmatpush1.msra.mxu0 %v915
    %949 = vmatprep.subr.mxu0 %v918
    %950 = vmatpush1.msra.mxu0 %v917
    %951 = vmatprep.subr.mxu0 %v920
    %952 = vmatpush1.msra.mxu0 %v919
    %953 = vmatprep.subr.mxu0 %v922
    %954 = vmatpush1.msra.mxu0 %v921
    %955 = vmatprep.subr.mxu0 %v924
    %956 = vmatpush1.msra.mxu0 %v923
    %957 = vmatprep.subr.mxu0 %v926
    %958 = vmatpush1.msra.mxu0 %v925
    %959 = vmatprep.subr.mxu0 %v928
    %960 = vmatpush1.msra.mxu0 %v927
    %961 = vmatprep.subr.mxu0 0.0
    %962 = vmatpush1.msra.mxu0 0.0
    %963 = vmatprep.subr.mxu0 0.0
    %964 = vmatpush1.msra.mxu0 0.0
    %965 = vmatprep.subr.mxu0 0.0
    %966 = vmatpush1.msra.mxu0 0.0
    %967 = vmatprep.subr.mxu0 0.0
    %968 = vmatpush1.msra.mxu0 0.0
    %969 = vmatprep.subr.mxu0 0.0
    %970 = vmatpush1.msra.mxu0 0.0
    %971 = vmatprep.subr.mxu0 0.0
    %972 = vmatpush1.msra.mxu0 0.0
    %973 = vmatprep.subr.mxu0 0.0
    %974 = vmatpush1.msra.mxu0 0.0
    %975 = vmatprep.subr.mxu0 0.0
    %976 = vmatpush1.msra.mxu0 0.0
    %977 = vmatprep.subr.mxu0 0.0
    %978 = vmatpush1.msra.mxu0 0.0
    %979 = vmatprep.subr.mxu0 0.0
    %980 = vmatpush1.msra.mxu0 0.0
    %981 = vmatprep.subr.mxu0 0.0
    %982 = vmatpush1.msra.mxu0 0.0
    %983 = vmatprep.subr.mxu0 0.0
    %984 = vmatpush1.msra.mxu0 0.0
    %985 = vmatprep.subr.mxu0 0.0
    %986 = vmatpush1.msra.mxu0 0.0
    %987 = vmatprep.subr.mxu0 0.0
    %988 = vmatpush1.msra.mxu0 0.0
    %989 = vmatprep.subr.mxu0 0.0
    %990 = vmatpush1.msra.mxu0 0.0
    %991 = vmatprep.subr.mxu0 0.0
    %992 = vmatpush1.msra.mxu0 0.0
    %993 = vmatprep.mubr.f32.mxu0 0.0
    %994 = vmatmul.mubr.f32.gmra.mrb[0].mxu0 %v890
    %v995 = vpop.f32.mrb[0].mxu0
    %v996 = vadd.f32 0.0, %v995
    %v997 = vpop.f32.mrb[0].mxu0
    %v998 = vadd.f32 0.0, %v997
    %999 = vmatprep.mubr.f32.mxu0 0.0
    %1000 = vmatmul.mubr.f32.gmra.mrb[0].mxu0 %v893
    %v1001 = vpop.f32.mrb[0].mxu0
    %v1002 = vadd.f32 0.0, %v1001
    %v1003 = vpop.f32.mrb[0].mxu0
    %v1004 = vadd.f32 0.0, %v1003
    %1005 = vdwg.mxu0
    %1006 = vmatprep.subr.mxu0 %v852
    %1007 = vmatpush1.msra.mxu0 %v851
    %1008 = vmatprep.subr.mxu0 %v854
    %1009 = vmatpush1.msra.mxu0 %v853
    %1010 = vmatprep.subr.mxu0 %v856
    %1011 = vmatpush1.msra.mxu0 %v855
    %1012 = vmatprep.subr.mxu0 %v858
    %1013 = vmatpush1.msra.mxu0 %v857
    %1014 = vmatprep.subr.mxu0 %v860
    %1015 = vmatpush1.msra.mxu0 %v859
    %1016 = vmatprep.subr.mxu0 %v862
    %1017 = vmatpush1.msra.mxu0 %v861
    %1018 = vmatprep.subr.mxu0 %v864
    %1019 = vmatpush1.msra.mxu0 %v863
    %1020 = vmatprep.subr.mxu0 %v866
    %1021 = vmatpush1.msra.mxu0 %v865
    %1022 = vmatprep.subr.mxu0 %v868
    %1023 = vmatpush1.msra.mxu0 %v867
    %1024 = vmatprep.subr.mxu0 %v870
    %1025 = vmatpush1.msra.mxu0 %v869
    %1026 = vmatprep.subr.mxu0 %v872
    %1027 = vmatpush1.msra.mxu0 %v871
    %1028 = vmatprep.subr.mxu0 %v874
    %1029 = vmatpush1.msra.mxu0 %v873
    %1030 = vmatprep.subr.mxu0 %v876
    %1031 = vmatpush1.msra.mxu0 %v875
    %1032 = vmatprep.subr.mxu0 %v878
    %1033 = vmatpush1.msra.mxu0 %v877
    %1034 = vmatprep.subr.mxu0 %v880
    %1035 = vmatpush1.msra.mxu0 %v879
    %1036 = vmatprep.subr.mxu0 %v882
    %1037 = vmatpush1.msra.mxu0 %v881
    %1038 = vmatprep.subr.mxu0 0.0
    %1039 = vmatpush1.msra.mxu0 0.0
    %1040 = vmatprep.subr.mxu0 0.0
    %1041 = vmatpush1.msra.mxu0 0.0
    %1042 = vmatprep.subr.mxu0 0.0
    %1043 = vmatpush1.msra.mxu0 0.0
    %1044 = vmatprep.subr.mxu0 0.0
    %1045 = vmatpush1.msra.mxu0 0.0
    %1046 = vmatprep.subr.mxu0 0.0
    %1047 = vmatpush1.msra.mxu0 0.0
    %1048 = vmatprep.subr.mxu0 0.0
    %1049 = vmatpush1.msra.mxu0 0.0
    %1050 = vmatprep.subr.mxu0 0.0
    %1051 = vmatpush1.msra.mxu0 0.0
    %1052 = vmatprep.subr.mxu0 0.0
    %1053 = vmatpush1.msra.mxu0 0.0
    %1054 = vmatprep.subr.mxu0 0.0
    %1055 = vmatpush1.msra.mxu0 0.0
    %1056 = vmatprep.subr.mxu0 0.0
    %1057 = vmatpush1.msra.mxu0 0.0
    %1058 = vmatprep.subr.mxu0 0.0
    %1059 = vmatpush1.msra.mxu0 0.0
    %1060 = vmatprep.subr.mxu0 0.0
    %1061 = vmatpush1.msra.mxu0 0.0
    %1062 = vmatprep.subr.mxu0 0.0
    %1063 = vmatpush1.msra.mxu0 0.0
    %1064 = vmatprep.subr.mxu0 0.0
    %1065 = vmatpush1.msra.mxu0 0.0
    %1066 = vmatprep.subr.mxu0 0.0
    %1067 = vmatpush1.msra.mxu0 0.0
    %1068 = vmatprep.subr.mxu0 0.0
    %1069 = vmatpush1.msra.mxu0 0.0
    %1070 = vmatprep.mubr.f32.mxu0 0.0
    %1071 = vmatmul.mubr.f32.gmra.mrb[0].mxu0 %v847
    %v1072 = vpop.f32.mrb[0].mxu0
    %v1073 = vadd.f32 %v996, %v1072
    %v1074 = vpop.f32.mrb[0].mxu0
    %v1075 = vadd.f32 %v998, %v1074
    %1076 = vmatprep.mubr.f32.mxu0 0.0
    %1077 = vmatmul.mubr.f32.gmra.mrb[0].mxu0 %v849
    %v1078 = vpop.f32.mrb[0].mxu0
    %v1079 = vadd.f32 %v1002, %v1078
    %v1080 = vpop.f32.mrb[0].mxu0
    %v1081 = vadd.f32 %v1004, %v1080
    %1082 = vdwg.mxu0
    %vm1083 = vcmask 1045504
    %v1084 = vrot.slane %v847, 2
    %v1085 = vrot.slane %v848, 2
    %v1086 = vsel %vm1083, %v1084, %v1085
    %v1087 = vrot.slane %v849, 2
    %v1088 = vrot.slane %v850, 2
    %v1089 = vsel %vm1083, %v1087, %v1088
    %s1092 = scalar_lea.vmem [#allocation4], 512
    %v1093 = vld [vmem:[%s1092] sm:$0xff]
    %v1094 = vld [vmem:[%s1092 + $0x8] sm:$0xff]
    %v1095 = vld [vmem:[%s1092 + $0x10] sm:$0xff]
    %v1096 = vld [vmem:[%s1092 + $0x18] sm:$0xff]
    %v1097 = vld [vmem:[%s1092 + $0x20] sm:$0xff]
    %v1098 = vld [vmem:[%s1092 + $0x28] sm:$0xff]
    %v1099 = vld [vmem:[%s1092 + $0x30] sm:$0xff]
    %v1100 = vld [vmem:[%s1092 + $0x38] sm:$0xff]
    %v1101 = vld [vmem:[%s1092 + $0x40] sm:$0xff]
    %v1102 = vld [vmem:[%s1092 + $0x48] sm:$0xff]
    %v1103 = vld [vmem:[%s1092 + $0x50] sm:$0xff]
    %v1104 = vld [vmem:[%s1092 + $0x58] sm:$0xff]
    %v1105 = vld [vmem:[%s1092 + $0x60] sm:$0xff]
    %v1106 = vld [vmem:[%s1092 + $0x68] sm:$0xff]
    %v1107 = vld [vmem:[%s1092 + $0x70] sm:$0xff]
    %v1108 = vld [vmem:[%s1092 + $0x78] sm:$0xff]
    %v1109 = vld [vmem:[%s1092 + $0x80] sm:$0xff]
    %v1110 = vld [vmem:[%s1092 + $0x88] sm:$0xff]
    %v1111 = vld [vmem:[%s1092 + $0x90] sm:$0xff]
    %v1112 = vld [vmem:[%s1092 + $0x98] sm:$0xff]
    %v1113 = vld [vmem:[%s1092 + $0xa0] sm:$0xff]
    %v1114 = vld [vmem:[%s1092 + $0xa8] sm:$0xff]
    %v1115 = vld [vmem:[%s1092 + $0xb0] sm:$0xff]
    %v1116 = vld [vmem:[%s1092 + $0xb8] sm:$0xff]
    %v1117 = vld [vmem:[%s1092 + $0xc0] sm:$0xff]
    %v1118 = vld [vmem:[%s1092 + $0xc8] sm:$0xff]
    %v1119 = vld [vmem:[%s1092 + $0xd0] sm:$0xff]
    %v1120 = vld [vmem:[%s1092 + $0xd8] sm:$0xff]
    %v1121 = vld [vmem:[%s1092 + $0xe0] sm:$0xff]
    %v1122 = vld [vmem:[%s1092 + $0xe8] sm:$0xff]
    %v1123 = vld [vmem:[%s1092 + $0xf0] sm:$0xff]
    %v1124 = vld [vmem:[%s1092 + $0xf8] sm:$0xff]
    %1125 = vmatprep.subr.mxu0 %v1094
    %1126 = vmatpush1.msra.mxu0 %v1093
    %1127 = vmatprep.subr.mxu0 %v1096
    %1128 = vmatpush1.msra.mxu0 %v1095
    %1129 = vmatprep.subr.mxu0 %v1098
    %1130 = vmatpush1.msra.mxu0 %v1097
    %1131 = vmatprep.subr.mxu0 %v1100
    %1132 = vmatpush1.msra.mxu0 %v1099
    %1133 = vmatprep.subr.mxu0 %v1102
    %1134 = vmatpush1.msra.mxu0 %v1101
    %1135 = vmatprep.subr.mxu0 %v1104
    %1136 = vmatpush1.msra.mxu0 %v1103
    %1137 = vmatprep.subr.mxu0 %v1106
    %1138 = vmatpush1.msra.mxu0 %v1105
    %1139 = vmatprep.subr.mxu0 %v1108
    %1140 = vmatpush1.msra.mxu0 %v1107
    %1141 = vmatprep.subr.mxu0 %v1110
    %1142 = vmatpush1.msra.mxu0 %v1109
    %1143 = vmatprep.subr.mxu0 %v1112
    %1144 = vmatpush1.msra.mxu0 %v1111
    %1145 = vmatprep.subr.mxu0 %v1114
    %1146 = vmatpush1.msra.mxu0 %v1113
    %1147 = vmatprep.subr.mxu0 %v1116
    %1148 = vmatpush1.msra.mxu0 %v1115
    %1149 = vmatprep.subr.mxu0 %v1118
    %1150 = vmatpush1.msra.mxu0 %v1117
    %1151 = vmatprep.subr.mxu0 %v1120
    %1152 = vmatpush1.msra.mxu0 %v1119
    %1153 = vmatprep.subr.mxu0 %v1122
    %1154 = vmatpush1.msra.mxu0 %v1121
    %1155 = vmatprep.subr.mxu0 %v1124
    %1156 = vmatpush1.msra.mxu0 %v1123
    %1157 = vmatprep.subr.mxu0 0.0
    %1158 = vmatpush1.msra.mxu0 0.0
    %1159 = vmatprep.subr.mxu0 0.0
    %1160 = vmatpush1.msra.mxu0 0.0
    %1161 = vmatprep.subr.mxu0 0.0
    %1162 = vmatpush1.msra.mxu0 0.0
    %1163 = vmatprep.subr.mxu0 0.0
    %1164 = vmatpush1.msra.mxu0 0.0
    %1165 = vmatprep.subr.mxu0 0.0
    %1166 = vmatpush1.msra.mxu0 0.0
    %1167 = vmatprep.subr.mxu0 0.0
    %1168 = vmatpush1.msra.mxu0 0.0
    %1169 = vmatprep.subr.mxu0 0.0
    %1170 = vmatpush1.msra.mxu0 0.0
    %1171 = vmatprep.subr.mxu0 0.0
    %1172 = vmatpush1.msra.mxu0 0.0
    %1173 = vmatprep.subr.mxu0 0.0
    %1174 = vmatpush1.msra.mxu0 0.0
    %1175 = vmatprep.subr.mxu0 0.0
    %1176 = vmatpush1.msra.mxu0 0.0
    %1177 = vmatprep.subr.mxu0 0.0
    %1178 = vmatpush1.msra.mxu0 0.0
    %1179 = vmatprep.subr.mxu0 0.0
    %1180 = vmatpush1.msra.mxu0 0.0
    %1181 = vmatprep.subr.mxu0 0.0
    %1182 = vmatpush1.msra.mxu0 0.0
    %1183 = vmatprep.subr.mxu0 0.0
    %1184 = vmatpush1.msra.mxu0 0.0
    %1185 = vmatprep.subr.mxu0 0.0
    %1186 = vmatpush1.msra.mxu0 0.0
    %1187 = vmatprep.subr.mxu0 0.0
    %1188 = vmatpush1.msra.mxu0 0.0
    %1189 = vmatprep.mubr.f32.mxu0 0.0
    %1190 = vmatmul.mubr.f32.gmra.mrb[0].mxu0 %v1086
    %v1191 = vpop.f32.mrb[0].mxu0
    %v1192 = vadd.f32 0.0, %v1191
    %v1193 = vpop.f32.mrb[0].mxu0
    %v1194 = vadd.f32 0.0, %v1193
    %1195 = vmatprep.mubr.f32.mxu0 0.0
    %1196 = vmatmul.mubr.f32.gmra.mrb[0].mxu0 %v1089
    %v1197 = vpop.f32.mrb[0].mxu0
    %v1198 = vadd.f32 0.0, %v1197
    %v1199 = vpop.f32.mrb[0].mxu0
    %v1200 = vadd.f32 0.0, %v1199
    %1201 = vdwg.mxu0
    %v1202 = vadd.f32 %v1073, %v1192
    %v1203 = vadd.f32 %v1075, %v1194
    %v1204 = vadd.f32 %v1079, %v1198
    %v1205 = vadd.f32 %v1081, %v1200
    %vm1206 = vcmask 1044480
    %v1207 = vrot.slane %v847, 3
    %v1208 = vrot.slane %v848, 3
    %v1209 = vsel %vm1206, %v1207, %v1208
    %v1210 = vrot.slane %v849, 3
    %v1211 = vrot.slane %v850, 3
    %v1212 = vsel %vm1206, %v1210, %v1211
    %s1215 = scalar_lea.vmem [#allocation4], 768
    %v1216 = vld [vmem:[%s1215] sm:$0xff]
    %v1217 = vld [vmem:[%s1215 + $0x8] sm:$0xff]
    %v1218 = vld [vmem:[%s1215 + $0x10] sm:$0xff]
    %v1219 = vld [vmem:[%s1215 + $0x18] sm:$0xff]
    %v1220 = vld [vmem:[%s1215 + $0x20] sm:$0xff]
    %v1221 = vld [vmem:[%s1215 + $0x28] sm:$0xff]
    %v1222 = vld [vmem:[%s1215 + $0x30] sm:$0xff]
    %v1223 = vld [vmem:[%s1215 + $0x38] sm:$0xff]
    %v1224 = vld [vmem:[%s1215 + $0x40] sm:$0xff]
    %v1225 = vld [vmem:[%s1215 + $0x48] sm:$0xff]
    %v1226 = vld [vmem:[%s1215 + $0x50] sm:$0xff]
    %v1227 = vld [vmem:[%s1215 + $0x58] sm:$0xff]
    %v1228 = vld [vmem:[%s1215 + $0x60] sm:$0xff]
    %v1229 = vld [vmem:[%s1215 + $0x68] sm:$0xff]
    %v1230 = vld [vmem:[%s1215 + $0x70] sm:$0xff]
    %v1231 = vld [vmem:[%s1215 + $0x78] sm:$0xff]
    %v1232 = vld [vmem:[%s1215 + $0x80] sm:$0xff]
    %v1233 = vld [vmem:[%s1215 + $0x88] sm:$0xff]
    %v1234 = vld [vmem:[%s1215 + $0x90] sm:$0xff]
    %v1235 = vld [vmem:[%s1215 + $0x98] sm:$0xff]
    %v1236 = vld [vmem:[%s1215 + $0xa0] sm:$0xff]
    %v1237 = vld [vmem:[%s1215 + $0xa8] sm:$0xff]
    %v1238 = vld [vmem:[%s1215 + $0xb0] sm:$0xff]
    %v1239 = vld [vmem:[%s1215 + $0xb8] sm:$0xff]
    %v1240 = vld [vmem:[%s1215 + $0xc0] sm:$0xff]
    %v1241 = vld [vmem:[%s1215 + $0xc8] sm:$0xff]
    %v1242 = vld [vmem:[%s1215 + $0xd0] sm:$0xff]
    %v1243 = vld [vmem:[%s1215 + $0xd8] sm:$0xff]
    %v1244 = vld [vmem:[%s1215 + $0xe0] sm:$0xff]
    %v1245 = vld [vmem:[%s1215 + $0xe8] sm:$0xff]
    %v1246 = vld [vmem:[%s1215 + $0xf0] sm:$0xff]
    %v1247 = vld [vmem:[%s1215 + $0xf8] sm:$0xff]
    %1248 = vmatprep.subr.mxu0 %v1217
    %1249 = vmatpush1.msra.mxu0 %v1216
    %1250 = vmatprep.subr.mxu0 %v1219
    %1251 = vmatpush1.msra.mxu0 %v1218
    %1252 = vmatprep.subr.mxu0 %v1221
    %1253 = vmatpush1.msra.mxu0 %v1220
    %1254 = vmatprep.subr.mxu0 %v1223
    %1255 = vmatpush1.msra.mxu0 %v1222
    %1256 = vmatprep.subr.mxu0 %v1225
    %1257 = vmatpush1.msra.mxu0 %v1224
    %1258 = vmatprep.subr.mxu0 %v1227
    %1259 = vmatpush1.msra.mxu0 %v1226
    %1260 = vmatprep.subr.mxu0 %v1229
    %1261 = vmatpush1.msra.mxu0 %v1228
    %1262 = vmatprep.subr.mxu0 %v1231
    %1263 = vmatpush1.msra.mxu0 %v1230
    %1264 = vmatprep.subr.mxu0 %v1233
    %1265 = vmatpush1.msra.mxu0 %v1232
    %1266 = vmatprep.subr.mxu0 %v1235
    %1267 = vmatpush1.msra.mxu0 %v1234
    %1268 = vmatprep.subr.mxu0 %v1237
    %1269 = vmatpush1.msra.mxu0 %v1236
    %1270 = vmatprep.subr.mxu0 %v1239
    %1271 = vmatpush1.msra.mxu0 %v1238
    %1272 = vmatprep.subr.mxu0 %v1241
    %1273 = vmatpush1.msra.mxu0 %v1240
    %1274 = vmatprep.subr.mxu0 %v1243
    %1275 = vmatpush1.msra.mxu0 %v1242
    %1276 = vmatprep.subr.mxu0 %v1245
    %1277 = vmatpush1.msra.mxu0 %v1244
    %1278 = vmatprep.subr.mxu0 %v1247
    %1279 = vmatpush1.msra.mxu0 %v1246
    %1280 = vmatprep.subr.mxu0 0.0
    %1281 = vmatpush1.msra.mxu0 0.0
    %1282 = vmatprep.subr.mxu0 0.0
    %1283 = vmatpush1.msra.mxu0 0.0
    %1284 = vmatprep.subr.mxu0 0.0
    %1285 = vmatpush1.msra.mxu0 0.0
    %1286 = vmatprep.subr.mxu0 0.0
    %1287 = vmatpush1.msra.mxu0 0.0
    %1288 = vmatprep.subr.mxu0 0.0
    %1289 = vmatpush1.msra.mxu0 0.0
    %1290 = vmatprep.subr.mxu0 0.0
    %1291 = vmatpush1.msra.mxu0 0.0
    %1292 = vmatprep.subr.mxu0 0.0
    %1293 = vmatpush1.msra.mxu0 0.0
    %1294 = vmatprep.subr.mxu0 0.0
    %1295 = vmatpush1.msra.mxu0 0.0
    %1296 = vmatprep.subr.mxu0 0.0
    %1297 = vmatpush1.msra.mxu0 0.0
    %1298 = vmatprep.subr.mxu0 0.0
    %1299 = vmatpush1.msra.mxu0 0.0
    %1300 = vmatprep.subr.mxu0 0.0
    %1301 = vmatpush1.msra.mxu0 0.0
    %1302 = vmatprep.subr.mxu0 0.0
    %1303 = vmatpush1.msra.mxu0 0.0
    %1304 = vmatprep.subr.mxu0 0.0
    %1305 = vmatpush1.msra.mxu0 0.0
    %1306 = vmatprep.subr.mxu0 0.0
    %1307 = vmatpush1.msra.mxu0 0.0
    %1308 = vmatprep.subr.mxu0 0.0
    %1309 = vmatpush1.msra.mxu0 0.0
    %1310 = vmatprep.subr.mxu0 0.0
    %1311 = vmatpush1.msra.mxu0 0.0
    %1312 = vmatprep.mubr.f32.mxu0 0.0
    %1313 = vmatmul.mubr.f32.gmra.mrb[0].mxu0 %v1209
    %v1314 = vpop.f32.mrb[0].mxu0
    %v1315 = vadd.f32 0.0, %v1314
    %v1316 = vpop.f32.mrb[0].mxu0
    %v1317 = vadd.f32 0.0, %v1316
    %1318 = vmatprep.mubr.f32.mxu0 0.0
    %1319 = vmatmul.mubr.f32.gmra.mrb[0].mxu0 %v1212
    %v1320 = vpop.f32.mrb[0].mxu0
    %v1321 = vadd.f32 0.0, %v1320
    %v1322 = vpop.f32.mrb[0].mxu0
    %v1323 = vadd.f32 0.0, %v1322
    %1324 = vdwg.mxu0
    %v1325 = vadd.f32 %v1202, %v1315
    %v1326 = vadd.f32 %v1203, %v1317
    %v1327 = vadd.f32 %v1204, %v1321
    %v1328 = vadd.f32 %v1205, %v1323
    %v1329 = vrot.slane %v847, 4
    %v1330 = vrot.slane %v848, 4
    %v1331 = vsel %vm95, %v1329, %v1330
    %v1332 = vrot.slane %v849, 4
    %v1333 = vrot.slane %v850, 4
    %v1334 = vsel %vm95, %v1332, %v1333
    %s1337 = scalar_lea.vmem [#allocation4], 1024
    %v1338 = vld [vmem:[%s1337] sm:$0xff]
    %v1339 = vld [vmem:[%s1337 + $0x8] sm:$0xff]
    %v1340 = vld [vmem:[%s1337 + $0x10] sm:$0xff]
    %v1341 = vld [vmem:[%s1337 + $0x18] sm:$0xff]
    %v1342 = vld [vmem:[%s1337 + $0x20] sm:$0xff]
    %v1343 = vld [vmem:[%s1337 + $0x28] sm:$0xff]
    %v1344 = vld [vmem:[%s1337 + $0x30] sm:$0xff]
    %v1345 = vld [vmem:[%s1337 + $0x38] sm:$0xff]
    %v1346 = vld [vmem:[%s1337 + $0x40] sm:$0xff]
    %v1347 = vld [vmem:[%s1337 + $0x48] sm:$0xff]
    %v1348 = vld [vmem:[%s1337 + $0x50] sm:$0xff]
    %v1349 = vld [vmem:[%s1337 + $0x58] sm:$0xff]
    %v1350 = vld [vmem:[%s1337 + $0x60] sm:$0xff]
    %v1351 = vld [vmem:[%s1337 + $0x68] sm:$0xff]
    %v1352 = vld [vmem:[%s1337 + $0x70] sm:$0xff]
    %v1353 = vld [vmem:[%s1337 + $0x78] sm:$0xff]
    %v1354 = vld [vmem:[%s1337 + $0x80] sm:$0xff]
    %v1355 = vld [vmem:[%s1337 + $0x88] sm:$0xff]
    %v1356 = vld [vmem:[%s1337 + $0x90] sm:$0xff]
    %v1357 = vld [vmem:[%s1337 + $0x98] sm:$0xff]
    %v1358 = vld [vmem:[%s1337 + $0xa0] sm:$0xff]
    %v1359 = vld [vmem:[%s1337 + $0xa8] sm:$0xff]
    %v1360 = vld [vmem:[%s1337 + $0xb0] sm:$0xff]
    %v1361 = vld [vmem:[%s1337 + $0xb8] sm:$0xff]
    %v1362 = vld [vmem:[%s1337 + $0xc0] sm:$0xff]
    %v1363 = vld [vmem:[%s1337 + $0xc8] sm:$0xff]
    %v1364 = vld [vmem:[%s1337 + $0xd0] sm:$0xff]
    %v1365 = vld [vmem:[%s1337 + $0xd8] sm:$0xff]
    %v1366 = vld [vmem:[%s1337 + $0xe0] sm:$0xff]
    %v1367 = vld [vmem:[%s1337 + $0xe8] sm:$0xff]
    %v1368 = vld [vmem:[%s1337 + $0xf0] sm:$0xff]
    %v1369 = vld [vmem:[%s1337 + $0xf8] sm:$0xff]
    %1370 = vmatprep.subr.mxu0 %v1339
    %1371 = vmatpush1.msra.mxu0 %v1338
    %1372 = vmatprep.subr.mxu0 %v1341
    %1373 = vmatpush1.msra.mxu0 %v1340
    %1374 = vmatprep.subr.mxu0 %v1343
    %1375 = vmatpush1.msra.mxu0 %v1342
    %1376 = vmatprep.subr.mxu0 %v1345
    %1377 = vmatpush1.msra.mxu0 %v1344
    %1378 = vmatprep.subr.mxu0 %v1347
    %1379 = vmatpush1.msra.mxu0 %v1346
    %1380 = vmatprep.subr.mxu0 %v1349
    %1381 = vmatpush1.msra.mxu0 %v1348
    %1382 = vmatprep.subr.mxu0 %v1351
    %1383 = vmatpush1.msra.mxu0 %v1350
    %1384 = vmatprep.subr.mxu0 %v1353
    %1385 = vmatpush1.msra.mxu0 %v1352
    %1386 = vmatprep.subr.mxu0 %v1355
    %1387 = vmatpush1.msra.mxu0 %v1354
    %1388 = vmatprep.subr.mxu0 %v1357
    %1389 = vmatpush1.msra.mxu0 %v1356
    %1390 = vmatprep.subr.mxu0 %v1359
    %1391 = vmatpush1.msra.mxu0 %v1358
    %1392 = vmatprep.subr.mxu0 %v1361
    %1393 = vmatpush1.msra.mxu0 %v1360
    %1394 = vmatprep.subr.mxu0 %v1363
    %1395 = vmatpush1.msra.mxu0 %v1362
    %1396 = vmatprep.subr.mxu0 %v1365
    %1397 = vmatpush1.msra.mxu0 %v1364
    %1398 = vmatprep.subr.mxu0 %v1367
    %1399 = vmatpush1.msra.mxu0 %v1366
    %1400 = vmatprep.subr.mxu0 %v1369
    %1401 = vmatpush1.msra.mxu0 %v1368
    %1402 = vmatprep.subr.mxu0 0.0
    %1403 = vmatpush1.msra.mxu0 0.0
    %1404 = vmatprep.subr.mxu0 0.0
    %1405 = vmatpush1.msra.mxu0 0.0
    %1406 = vmatprep.subr.mxu0 0.0
    %1407 = vmatpush1.msra.mxu0 0.0
    %1408 = vmatprep.subr.mxu0 0.0
    %1409 = vmatpush1.msra.mxu0 0.0
    %1410 = vmatprep.subr.mxu0 0.0
    %1411 = vmatpush1.msra.mxu0 0.0
    %1412 = vmatprep.subr.mxu0 0.0
    %1413 = vmatpush1.msra.mxu0 0.0
    %1414 = vmatprep.subr.mxu0 0.0
    %1415 = vmatpush1.msra.mxu0 0.0
    %1416 = vmatprep.subr.mxu0 0.0
    %1417 = vmatpush1.msra.mxu0 0.0
    %1418 = vmatprep.subr.mxu0 0.0
    %1419 = vmatpush1.msra.mxu0 0.0
    %1420 = vmatprep.subr.mxu0 0.0
    %1421 = vmatpush1.msra.mxu0 0.0
    %1422 = vmatprep.subr.mxu0 0.0
    %1423 = vmatpush1.msra.mxu0 0.0
    %1424 = vmatprep.subr.mxu0 0.0
    %1425 = vmatpush1.msra.mxu0 0.0
    %1426 = vmatprep.subr.mxu0 0.0
    %1427 = vmatpush1.msra.mxu0 0.0
    %1428 = vmatprep.subr.mxu0 0.0
    %1429 = vmatpush1.msra.mxu0 0.0
    %1430 = vmatprep.subr.mxu0 0.0
    %1431 = vmatpush1.msra.mxu0 0.0
    %1432 = vmatprep.subr.mxu0 0.0
    %1433 = vmatpush1.msra.mxu0 0.0
    %1434 = vmatprep.mubr.f32.mxu0 0.0
    %1435 = vmatmul.mubr.f32.gmra.mrb[0].mxu0 %v1331
    %v1436 = vpop.f32.mrb[0].mxu0
    %v1437 = vadd.f32 0.0, %v1436
    %v1438 = vpop.f32.mrb[0].mxu0
    %v1439 = vadd.f32 0.0, %v1438
    %1440 = vmatprep.mubr.f32.mxu0 0.0
    %1441 = vmatmul.mubr.f32.gmra.mrb[0].mxu0 %v1334
    %v1442 = vpop.f32.mrb[0].mxu0
    %v1443 = vadd.f32 0.0, %v1442
    %v1444 = vpop.f32.mrb[0].mxu0
    %v1445 = vadd.f32 0.0, %v1444
    %1446 = vdwg.mxu0
    %v1447 = vadd.f32 %v1325, %v1437
    %v1448 = vadd.f32 %v1326, %v1439
    %v1449 = vadd.f32 %v1327, %v1443
    %v1450 = vadd.f32 %v1328, %v1445
    %v1451 = vld [vmem:[%s4] sm:$0x3]
    %v1453 = vlaneseq
    %v1454 = vshrl.u32 %v1453, 7
    %v1455 = vsub.s32 0, %v1454
    %v1456 = vrot.slane %v1451, %v1455
    %v1457 = vlaneseq
    %v1458 = vshrl.u32 %v1457, 7
    %v1459 = vsub.s32 1, %v1458
    %v1460 = vrot.slane %v1451, %v1459
    %v1463 = vadd.f32 %v1447, %v1456
    %v1464 = vadd.f32 %v1448, %v1460
    %v1465 = vadd.f32 %v1449, %v1456
    %v1466 = vadd.f32 %v1450, %v1460
    %v1467 = vmax.f32 %v1463, 0.0
    %v1468 = vmax.f32 %v1464, 0.0
    %v1469 = vmax.f32 %v1465, 0.0
    %v1470 = vmax.f32 %v1466, 0.0
    %v1471 = vmax.f32 %v1467, %v1468
    %v1472 = vmax.f32 %v1469, %v1470
    %1473 = vst [vmem:[#allocation3] sm:$0xff] %v1471
    %1474 = vst [vmem:[#allocation3 + $0x8] sm:$0xff] %v1472
    %v1475 = vld [vmem:[#allocation3] ss:$2 sm:$0xf]
    %s1476 = scalar_lea.vmem [#allocation3], 8
    %v1477 = vld [vmem:[%s1476] ss:$2 sm:$0xf]
    %s1478 = scalar_lea.vmem [#allocation3], 1
    %v1479 = vld [vmem:[%s1478] ss:$2 sm:$0xf]
    %s1480 = scalar_lea.vmem [#allocation3], 9
    %v1481 = vld [vmem:[%s1480] ss:$2 sm:$0xf]
    %v1482 = vmax.f32 %v1475, %v1479
    %v1483 = vmax.f32 %v1477, %v1481
    %v1484 = vld [vmem:[%s6] sm:$0x1]
    %v1486 = vlaneseq
    %v1487 = vshrl.u32 %v1486, 7
    %v1488 = vsub.s32 0, %v1487
    %v1489 = vrot.slane %v1484, %v1488
    %v1491 = vadd.f32 %v1489, 0.0
    %v1492 = vld [vmem:[%s5] sm:$0xff]
    %v1493 = vld [vmem:[%s5 + $0x8] sm:$0xff]
    %v1494 = vld [vmem:[%s5 + $0x10] sm:$0xff]
    %v1495 = vld [vmem:[%s5 + $0x18] sm:$0xff]
    %v1496 = vld [vmem:[%s5 + $0x20] sm:$0xff]
    %v1497 = vld [vmem:[%s5 + $0x28] sm:$0xff]
    %v1498 = vld [vmem:[%s5 + $0x30] sm:$0xff]
    %v1499 = vld [vmem:[%s5 + $0x38] sm:$0xff]
    %v1500 = vld [vmem:[%s5 + $0x40] sm:$0xff]
    %v1501 = vld [vmem:[%s5 + $0x48] sm:$0xff]
    %v1502 = vld [vmem:[%s5 + $0x50] sm:$0xff]
    %v1503 = vld [vmem:[%s5 + $0x58] sm:$0xff]
    %v1504 = vld [vmem:[%s5 + $0x60] sm:$0xff]
    %v1505 = vld [vmem:[%s5 + $0x68] sm:$0xff]
    %v1506 = vld [vmem:[%s5 + $0x70] sm:$0xff]
    %v1507 = vld [vmem:[%s5 + $0x78] sm:$0xff]
    %v1510 = vrot.slane %v1483, 7
    %vm1511 = vcmask 1041409
    %v1512 = vsel %vm1511, %v1510, %v1482
    %1514 = vmatprep.subr.mxu0 0.0
    %1515 = vmatpush1.msra.mxu0 %v1492
    %1516 = vmatprep.subr.mxu0 0.0
    %1517 = vmatpush1.msra.mxu0 %v1493
    %1518 = vmatprep.subr.mxu0 0.0
    %1519 = vmatpush1.msra.mxu0 %v1494
    %1520 = vmatprep.subr.mxu0 0.0
    %1521 = vmatpush1.msra.mxu0 %v1495
    %1522 = vmatprep.subr.mxu0 0.0
    %1523 = vmatpush1.msra.mxu0 %v1496
    %1524 = vmatprep.subr.mxu0 0.0
    %1525 = vmatpush1.msra.mxu0 %v1497
    %1526 = vmatprep.subr.mxu0 0.0
    %1527 = vmatpush1.msra.mxu0 %v1498
    %1528 = vmatprep.subr.mxu0 0.0
    %1529 = vmatpush1.msra.mxu0 %v1499
    %1530 = vmatprep.subr.mxu0 0.0
    %1531 = vmatpush1.msra.mxu0 %v1500
    %1532 = vmatprep.subr.mxu0 0.0
    %1533 = vmatpush1.msra.mxu0 %v1501
    %1534 = vmatprep.subr.mxu0 0.0
    %1535 = vmatpush1.msra.mxu0 %v1502
    %1536 = vmatprep.subr.mxu0 0.0
    %1537 = vmatpush1.msra.mxu0 %v1503
    %1538 = vmatprep.subr.mxu0 0.0
    %1539 = vmatpush1.msra.mxu0 %v1504
    %1540 = vmatprep.subr.mxu0 0.0
    %1541 = vmatpush1.msra.mxu0 %v1505
    %1542 = vmatprep.subr.mxu0 0.0
    %1543 = vmatpush1.msra.mxu0 %v1506
    %1544 = vmatprep.subr.mxu0 0.0
    %1545 = vmatpush1.msra.mxu0 %v1507
    %1546 = vmatprep.subr.mxu0 0.0
    %1547 = vmatpush1.msra.mxu0 0.0
    %1548 = vmatprep.subr.mxu0 0.0
    %1549 = vmatpush1.msra.mxu0 0.0
    %1550 = vmatprep.subr.mxu0 0.0
    %1551 = vmatpush1.msra.mxu0 0.0
    %1552 = vmatprep.subr.mxu0 0.0
    %1553 = vmatpush1.msra.mxu0 0.0
    %1554 = vmatprep.subr.mxu0 0.0
    %1555 = vmatpush1.msra.mxu0 0.0
    %1556 = vmatprep.subr.mxu0 0.0
    %1557 = vmatpush1.msra.mxu0 0.0
    %1558 = vmatprep.subr.mxu0 0.0
    %1559 = vmatpush1.msra.mxu0 0.0
    %1560 = vmatprep.subr.mxu0 0.0
    %1561 = vmatpush1.msra.mxu0 0.0
    %1562 = vmatprep.subr.mxu0 0.0
    %1563 = vmatpush1.msra.mxu0 0.0
    %1564 = vmatprep.subr.mxu0 0.0
    %1565 = vmatpush1.msra.mxu0 0.0
    %1566 = vmatprep.subr.mxu0 0.0
    %1567 = vmatpush1.msra.mxu0 0.0
    %1568 = vmatprep.subr.mxu0 0.0
    %1569 = vmatpush1.msra.mxu0 0.0
    %1570 = vmatprep.subr.mxu0 0.0
    %1571 = vmatpush1.msra.mxu0 0.0
    %1572 = vmatprep.subr.mxu0 0.0
    %1573 = vmatpush1.msra.mxu0 0.0
    %1574 = vmatprep.subr.mxu0 0.0
    %1575 = vmatpush1.msra.mxu0 0.0
    %1576 = vmatprep.subr.mxu0 0.0
    %1577 = vmatpush1.msra.mxu0 0.0
    %1578 = vmatprep.mubr.f32.mxu0 0.0
    %1579 = vmatmul.mubr.f32.gmra.mrb[0].mxu0 %v1512
    %v1580 = vpop.f32.mrb[0].mxu0
    %v1581 = vadd.f32 0.0, %v1580
    %v1582 = vpop.f32.mrb[0].mxu0
    %1583 = vdwg.mxu0
    %v1584 = vadd.f32 %v1491, %v1581
    %s1585 = scalar_lea.vmem %s5, 128
    %v1586 = vld [vmem:[%s1585] sm:$0xff]
    %v1587 = vld [vmem:[%s1585 + $0x8] sm:$0xff]
    %v1588 = vld [vmem:[%s1585 + $0x10] sm:$0xff]
    %v1589 = vld [vmem:[%s1585 + $0x18] sm:$0xff]
    %v1590 = vld [vmem:[%s1585 + $0x20] sm:$0xff]
    %v1591 = vld [vmem:[%s1585 + $0x28] sm:$0xff]
    %v1592 = vld [vmem:[%s1585 + $0x30] sm:$0xff]
    %v1593 = vld [vmem:[%s1585 + $0x38] sm:$0xff]
    %v1594 = vld [vmem:[%s1585 + $0x40] sm:$0xff]
    %v1595 = vld [vmem:[%s1585 + $0x48] sm:$0xff]
    %v1596 = vld [vmem:[%s1585 + $0x50] sm:$0xff]
    %v1597 = vld [vmem:[%s1585 + $0x58] sm:$0xff]
    %v1598 = vld [vmem:[%s1585 + $0x60] sm:$0xff]
    %v1599 = vld [vmem:[%s1585 + $0x68] sm:$0xff]
    %v1600 = vld [vmem:[%s1585 + $0x70] sm:$0xff]
    %v1601 = vld [vmem:[%s1585 + $0x78] sm:$0xff]
    %v1602 = vrot.slane %v1482, 1
    %v1603 = vsel %vm1511, %v1483, %v1602
    %1605 = vmatprep.subr.mxu0 0.0
    %1606 = vmatpush1.msra.mxu0 %v1586
    %1607 = vmatprep.subr.mxu0 0.0
    %1608 = vmatpush1.msra.mxu0 %v1587
    %1609 = vmatprep.subr.mxu0 0.0
    %1610 = vmatpush1.msra.mxu0 %v1588
    %1611 = vmatprep.subr.mxu0 0.0
    %1612 = vmatpush1.msra.mxu0 %v1589
    %1613 = vmatprep.subr.mxu0 0.0
    %1614 = vmatpush1.msra.mxu0 %v1590
    %1615 = vmatprep.subr.mxu0 0.0
    %1616 = vmatpush1.msra.mxu0 %v1591
    %1617 = vmatprep.subr.mxu0 0.0
    %1618 = vmatpush1.msra.mxu0 %v1592
    %1619 = vmatprep.subr.mxu0 0.0
    %1620 = vmatpush1.msra.mxu0 %v1593
    %1621 = vmatprep.subr.mxu0 0.0
    %1622 = vmatpush1.msra.mxu0 %v1594
    %1623 = vmatprep.subr.mxu0 0.0
    %1624 = vmatpush1.msra.mxu0 %v1595
    %1625 = vmatprep.subr.mxu0 0.0
    %1626 = vmatpush1.msra.mxu0 %v1596
    %1627 = vmatprep.subr.mxu0 0.0
    %1628 = vmatpush1.msra.mxu0 %v1597
    %1629 = vmatprep.subr.mxu0 0.0
    %1630 = vmatpush1.msra.mxu0 %v1598
    %1631 = vmatprep.subr.mxu0 0.0
    %1632 = vmatpush1.msra.mxu0 %v1599
    %1633 = vmatprep.subr.mxu0 0.0
    %1634 = vmatpush1.msra.mxu0 %v1600
    %1635 = vmatprep.subr.mxu0 0.0
    %1636 = vmatpush1.msra.mxu0 %v1601
    %1637 = vmatprep.subr.mxu0 0.0
    %1638 = vmatpush1.msra.mxu0 0.0
    %1639 = vmatprep.subr.mxu0 0.0
    %1640 = vmatpush1.msra.mxu0 0.0
    %1641 = vmatprep.subr.mxu0 0.0
    %1642 = vmatpush1.msra.mxu0 0.0
    %1643 = vmatprep.subr.mxu0 0.0
    %1644 = vmatpush1.msra.mxu0 0.0
    %1645 = vmatprep.subr.mxu0 0.0
    %1646 = vmatpush1.msra.mxu0 0.0
    %1647 = vmatprep.subr.mxu0 0.0
    %1648 = vmatpush1.msra.mxu0 0.0
    %1649 = vmatprep.subr.mxu0 0.0
    %1650 = vmatpush1.msra.mxu0 0.0
    %1651 = vmatprep.subr.mxu0 0.0
    %1652 = vmatpush1.msra.mxu0 0.0
    %1653 = vmatprep.subr.mxu0 0.0
    %1654 = vmatpush1.msra.mxu0 0.0
    %1655 = vmatprep.subr.mxu0 0.0
    %1656 = vmatpush1.msra.mxu0 0.0
    %1657 = vmatprep.subr.mxu0 0.0
    %1658 = vmatpush1.msra.mxu0 0.0
    %1659 = vmatprep.subr.mxu0 0.0
    %1660 = vmatpush1.msra.mxu0 0.0
    %1661 = vmatprep.subr.mxu0 0.0
    %1662 = vmatpush1.msra.mxu0 0.0
    %1663 = vmatprep.subr.mxu0 0.0
    %1664 = vmatpush1.msra.mxu0 0.0
    %1665 = vmatprep.subr.mxu0 0.0
    %1666 = vmatpush1.msra.mxu0 0.0
    %1667 = vmatprep.subr.mxu0 0.0
    %1668 = vmatpush1.msra.mxu0 0.0
    %1669 = vmatprep.mubr.f32.mxu0 0.0
    %1670 = vmatmul.mubr.f32.gmra.mrb[0].mxu0 %v1603
    %v1671 = vpop.f32.mrb[0].mxu0
    %v1672 = vadd.f32 0.0, %v1671
    %v1673 = vpop.f32.mrb[0].mxu0
    %1674 = vdwg.mxu0
    %v1675 = vadd.f32 %v1584, %v1672
    %s1676 = scalar_lea.vmem %s5, 256
    %v1677 = vld [vmem:[%s1676] sm:$0xff]
    %v1678 = vld [vmem:[%s1676 + $0x8] sm:$0xff]
    %v1679 = vld [vmem:[%s1676 + $0x10] sm:$0xff]
    %v1680 = vld [vmem:[%s1676 + $0x18] sm:$0xff]
    %v1681 = vld [vmem:[%s1676 + $0x20] sm:$0xff]
    %v1682 = vld [vmem:[%s1676 + $0x28] sm:$0xff]
    %v1683 = vld [vmem:[%s1676 + $0x30] sm:$0xff]
    %v1684 = vld [vmem:[%s1676 + $0x38] sm:$0xff]
    %v1685 = vld [vmem:[%s1676 + $0x40] sm:$0xff]
    %v1686 = vld [vmem:[%s1676 + $0x48] sm:$0xff]
    %v1687 = vld [vmem:[%s1676 + $0x50] sm:$0xff]
    %v1688 = vld [vmem:[%s1676 + $0x58] sm:$0xff]
    %v1689 = vld [vmem:[%s1676 + $0x60] sm:$0xff]
    %v1690 = vld [vmem:[%s1676 + $0x68] sm:$0xff]
    %v1691 = vld [vmem:[%s1676 + $0x70] sm:$0xff]
    %v1692 = vld [vmem:[%s1676 + $0x78] sm:$0xff]
    %v1693 = vrot.slane %v1482, 2
    %v1694 = vrot.slane %v1483, 1
    %v1695 = vsel %vm1511, %v1694, %v1693
    %1697 = vmatprep.subr.mxu0 0.0
    %1698 = vmatpush1.msra.mxu0 %v1677
    %1699 = vmatprep.subr.mxu0 0.0
    %1700 = vmatpush1.msra.mxu0 %v1678
    %1701 = vmatprep.subr.mxu0 0.0
    %1702 = vmatpush1.msra.mxu0 %v1679
    %1703 = vmatprep.subr.mxu0 0.0
    %1704 = vmatpush1.msra.mxu0 %v1680
    %1705 = vmatprep.subr.mxu0 0.0
    %1706 = vmatpush1.msra.mxu0 %v1681
    %1707 = vmatprep.subr.mxu0 0.0
    %1708 = vmatpush1.msra.mxu0 %v1682
    %1709 = vmatprep.subr.mxu0 0.0
    %1710 = vmatpush1.msra.mxu0 %v1683
    %1711 = vmatprep.subr.mxu0 0.0
    %1712 = vmatpush1.msra.mxu0 %v1684
    %1713 = vmatprep.subr.mxu0 0.0
    %1714 = vmatpush1.msra.mxu0 %v1685
    %1715 = vmatprep.subr.mxu0 0.0
    %1716 = vmatpush1.msra.mxu0 %v1686
    %1717 = vmatprep.subr.mxu0 0.0
    %1718 = vmatpush1.msra.mxu0 %v1687
    %1719 = vmatprep.subr.mxu0 0.0
    %1720 = vmatpush1.msra.mxu0 %v1688
    %1721 = vmatprep.subr.mxu0 0.0
    %1722 = vmatpush1.msra.mxu0 %v1689
    %1723 = vmatprep.subr.mxu0 0.0
    %1724 = vmatpush1.msra.mxu0 %v1690
    %1725 = vmatprep.subr.mxu0 0.0
    %1726 = vmatpush1.msra.mxu0 %v1691
    %1727 = vmatprep.subr.mxu0 0.0
    %1728 = vmatpush1.msra.mxu0 %v1692
    %1729 = vmatprep.subr.mxu0 0.0
    %1730 = vmatpush1.msra.mxu0 0.0
    %1731 = vmatprep.subr.mxu0 0.0
    %1732 = vmatpush1.msra.mxu0 0.0
    %1733 = vmatprep.subr.mxu0 0.0
    %1734 = vmatpush1.msra.mxu0 0.0
    %1735 = vmatprep.subr.mxu0 0.0
    %1736 = vmatpush1.msra.mxu0 0.0
    %1737 = vmatprep.subr.mxu0 0.0
    %1738 = vmatpush1.msra.mxu0 0.0
    %1739 = vmatprep.subr.mxu0 0.0
    %1740 = vmatpush1.msra.mxu0 0.0
    %1741 = vmatprep.subr.mxu0 0.0
    %1742 = vmatpush1.msra.mxu0 0.0
    %1743 = vmatprep.subr.mxu0 0.0
    %1744 = vmatpush1.msra.mxu0 0.0
    %1745 = vmatprep.subr.mxu0 0.0
    %1746 = vmatpush1.msra.mxu0 0.0
    %1747 = vmatprep.subr.mxu0 0.0
    %1748 = vmatpush1.msra.mxu0 0.0
    %1749 = vmatprep.subr.mxu0 0.0
    %1750 = vmatpush1.msra.mxu0 0.0
    %1751 = vmatprep.subr.mxu0 0.0
    %1752 = vmatpush1.msra.mxu0 0.0
    %1753 = vmatprep.subr.mxu0 0.0
    %1754 = vmatpush1.msra.mxu0 0.0
    %1755 = vmatprep.subr.mxu0 0.0
    %1756 = vmatpush1.msra.mxu0 0.0
    %1757 = vmatprep.subr.mxu0 0.0
    %1758 = vmatpush1.msra.mxu0 0.0
    %1759 = vmatprep.subr.mxu0 0.0
    %1760 = vmatpush1.msra.mxu0 0.0
    %1761 = vmatprep.mubr.f32.mxu0 0.0
    %1762 = vmatmul.mubr.f32.gmra.mrb[0].mxu0 %v1695
    %v1763 = vpop.f32.mrb[0].mxu0
    %v1764 = vadd.f32 0.0, %v1763
    %v1765 = vpop.f32.mrb[0].mxu0
    %1766 = vdwg.mxu0
    %v1767 = vadd.f32 %v1675, %v1764
    %s1768 = scalar_lea.vmem %s5, 384
    %v1769 = vld [vmem:[%s1768] sm:$0xff]
    %v1770 = vld [vmem:[%s1768 + $0x8] sm:$0xff]
    %v1771 = vld [vmem:[%s1768 + $0x10] sm:$0xff]
    %v1772 = vld [vmem:[%s1768 + $0x18] sm:$0xff]
    %v1773 = vld [vmem:[%s1768 + $0x20] sm:$0xff]
    %v1774 = vld [vmem:[%s1768 + $0x28] sm:$0xff]
    %v1775 = vld [vmem:[%s1768 + $0x30] sm:$0xff]
    %v1776 = vld [vmem:[%s1768 + $0x38] sm:$0xff]
    %v1777 = vld [vmem:[%s1768 + $0x40] sm:$0xff]
    %v1778 = vld [vmem:[%s1768 + $0x48] sm:$0xff]
    %v1779 = vld [vmem:[%s1768 + $0x50] sm:$0xff]
    %v1780 = vld [vmem:[%s1768 + $0x58] sm:$0xff]
    %v1781 = vld [vmem:[%s1768 + $0x60] sm:$0xff]
    %v1782 = vld [vmem:[%s1768 + $0x68] sm:$0xff]
    %v1783 = vld [vmem:[%s1768 + $0x70] sm:$0xff]
    %v1784 = vld [vmem:[%s1768 + $0x78] sm:$0xff]
    %v1785 = vrot.slane %v1482, 3
    %v1786 = vrot.slane %v1483, 2
    %v1787 = vsel %vm1511, %v1786, %v1785
    %1789 = vmatprep.subr.mxu0 0.0
    %1790 = vmatpush1.msra.mxu0 %v1769
    %1791 = vmatprep.subr.mxu0 0.0
    %1792 = vmatpush1.msra.mxu0 %v1770
    %1793 = vmatprep.subr.mxu0 0.0
    %1794 = vmatpush1.msra.mxu0 %v1771
    %1795 = vmatprep.subr.mxu0 0.0
    %1796 = vmatpush1.msra.mxu0 %v1772
    %1797 = vmatprep.subr.mxu0 0.0
    %1798 = vmatpush1.msra.mxu0 %v1773
    %1799 = vmatprep.subr.mxu0 0.0
    %1800 = vmatpush1.msra.mxu0 %v1774
    %1801 = vmatprep.subr.mxu0 0.0
    %1802 = vmatpush1.msra.mxu0 %v1775
    %1803 = vmatprep.subr.mxu0 0.0
    %1804 = vmatpush1.msra.mxu0 %v1776
    %1805 = vmatprep.subr.mxu0 0.0
    %1806 = vmatpush1.msra.mxu0 %v1777
    %1807 = vmatprep.subr.mxu0 0.0
    %1808 = vmatpush1.msra.mxu0 %v1778
    %1809 = vmatprep.subr.mxu0 0.0
    %1810 = vmatpush1.msra.mxu0 %v1779
    %1811 = vmatprep.subr.mxu0 0.0
    %1812 = vmatpush1.msra.mxu0 %v1780
    %1813 = vmatprep.subr.mxu0 0.0
    %1814 = vmatpush1.msra.mxu0 %v1781
    %1815 = vmatprep.subr.mxu0 0.0
    %1816 = vmatpush1.msra.mxu0 %v1782
    %1817 = vmatprep.subr.mxu0 0.0
    %1818 = vmatpush1.msra.mxu0 %v1783
    %1819 = vmatprep.subr.mxu0 0.0
    %1820 = vmatpush1.msra.mxu0 %v1784
    %1821 = vmatprep.subr.mxu0 0.0
    %1822 = vmatpush1.msra.mxu0 0.0
    %1823 = vmatprep.subr.mxu0 0.0
    %1824 = vmatpush1.msra.mxu0 0.0
    %1825 = vmatprep.subr.mxu0 0.0
    %1826 = vmatpush1.msra.mxu0 0.0
    %1827 = vmatprep.subr.mxu0 0.0
    %1828 = vmatpush1.msra.mxu0 0.0
    %1829 = vmatprep.subr.mxu0 0.0
    %1830 = vmatpush1.msra.mxu0 0.0
    %1831 = vmatprep.subr.mxu0 0.0
    %1832 = vmatpush1.msra.mxu0 0.0
    %1833 = vmatprep.subr.mxu0 0.0
    %1834 = vmatpush1.msra.mxu0 0.0
    %1835 = vmatprep.subr.mxu0 0.0
    %1836 = vmatpush1.msra.mxu0 0.0
    %1837 = vmatprep.subr.mxu0 0.0
    %1838 = vmatpush1.msra.mxu0 0.0
    %1839 = vmatprep.subr.mxu0 0.0
    %1840 = vmatpush1.msra.mxu0 0.0
    %1841 = vmatprep.subr.mxu0 0.0
    %1842 = vmatpush1.msra.mxu0 0.0
    %1843 = vmatprep.subr.mxu0 0.0
    %1844 = vmatpush1.msra.mxu0 0.0
    %1845 = vmatprep.subr.mxu0 0.0
    %1846 = vmatpush1.msra.mxu0 0.0
    %1847 = vmatprep.subr.mxu0 0.0
    %1848 = vmatpush1.msra.mxu0 0.0
    %1849 = vmatprep.subr.mxu0 0.0
    %1850 = vmatpush1.msra.mxu0 0.0
    %1851 = vmatprep.subr.mxu0 0.0
    %1852 = vmatpush1.msra.mxu0 0.0
    %1853 = vmatprep.mubr.f32.mxu0 0.0
    %1854 = vmatmul.mubr.f32.gmra.mrb[0].mxu0 %v1787
    %v1855 = vpop.f32.mrb[0].mxu0
    %v1856 = vadd.f32 0.0, %v1855
    %v1857 = vpop.f32.mrb[0].mxu0
    %1858 = vdwg.mxu0
    %v1859 = vadd.f32 %v1767, %v1856
    %v1860 = vmax.f32 %v1859, 0.0
    %v1861 = vld [vmem:[%s7] sm:$0xff]
    %v1862 = vld [vmem:[%s7 + $0x8] sm:$0xff]
    %v1863 = vld [vmem:[%s7 + $0x10] sm:$0xff]
    %v1864 = vld [vmem:[%s7 + $0x18] sm:$0xff]
    %v1865 = vld [vmem:[%s7 + $0x20] sm:$0xff]
    %v1866 = vld [vmem:[%s7 + $0x28] sm:$0xff]
    %v1867 = vld [vmem:[%s7 + $0x30] sm:$0xff]
    %v1868 = vld [vmem:[%s7 + $0x38] sm:$0xff]
    %v1869 = vld [vmem:[%s7 + $0x40] sm:$0xff]
    %v1870 = vld [vmem:[%s7 + $0x48] sm:$0xff]
    %v1871 = vld [vmem:[%s8] sm:$0x1]
    %v1873 = vlaneseq
    %v1874 = vshrl.u32 %v1873, 7
    %v1875 = vsub.s32 0, %v1874
    %v1876 = vrot.slane %v1871, %v1875
    %vm1878 = vcmask 654336
    %v1880 = vsel %vm1878, %v1860, 0
    %1882 = vmatprep.subr.mxu0 0.0
    %1883 = vmatpush1.msra.mxu0 %v1861
    %1884 = vmatprep.subr.mxu0 0.0
    %1885 = vmatpush1.msra.mxu0 %v1862
    %1886 = vmatprep.subr.mxu0 0.0
    %1887 = vmatpush1.msra.mxu0 %v1863
    %1888 = vmatprep.subr.mxu0 0.0
    %1889 = vmatpush1.msra.mxu0 %v1864
    %1890 = vmatprep.subr.mxu0 0.0
    %1891 = vmatpush1.msra.mxu0 %v1865
    %1892 = vmatprep.subr.mxu0 0.0
    %1893 = vmatpush1.msra.mxu0 %v1866
    %1894 = vmatprep.subr.mxu0 0.0
    %1895 = vmatpush1.msra.mxu0 %v1867
    %1896 = vmatprep.subr.mxu0 0.0
    %1897 = vmatpush1.msra.mxu0 %v1868
    %1898 = vmatprep.subr.mxu0 0.0
    %1899 = vmatpush1.msra.mxu0 %v1869
    %1900 = vmatprep.subr.mxu0 0.0
    %1901 = vmatpush1.msra.mxu0 %v1870
    %1902 = vmatprep.subr.mxu0 0.0
    %1903 = vmatpush1.msra.mxu0 0.0
    %1904 = vmatprep.subr.mxu0 0.0
    %1905 = vmatpush1.msra.mxu0 0.0
    %1906 = vmatprep.subr.mxu0 0.0
    %1907 = vmatpush1.msra.mxu0 0.0
    %1908 = vmatprep.subr.mxu0 0.0
    %1909 = vmatpush1.msra.mxu0 0.0
    %1910 = vmatprep.subr.mxu0 0.0
    %1911 = vmatpush1.msra.mxu0 0.0
    %1912 = vmatprep.subr.mxu0 0.0
    %1913 = vmatpush1.msra.mxu0 0.0
    %1914 = vmatprep.subr.mxu0 0.0
    %1915 = vmatpush1.msra.mxu0 0.0
    %1916 = vmatprep.subr.mxu0 0.0
    %1917 = vmatpush1.msra.mxu0 0.0
    %1918 = vmatprep.subr.mxu0 0.0
    %1919 = vmatpush1.msra.mxu0 0.0
    %1920 = vmatprep.subr.mxu0 0.0
    %1921 = vmatpush1.msra.mxu0 0.0
    %1922 = vmatprep.subr.mxu0 0.0
    %1923 = vmatpush1.msra.mxu0 0.0
    %1924 = vmatprep.subr.mxu0 0.0
    %1925 = vmatpush1.msra.mxu0 0.0
    %1926 = vmatprep.subr.mxu0 0.0
    %1927 = vmatpush1.msra.mxu0 0.0
    %1928 = vmatprep.subr.mxu0 0.0
    %1929 = vmatpush1.msra.mxu0 0.0
    %1930 = vmatprep.subr.mxu0 0.0
    %1931 = vmatpush1.msra.mxu0 0.0
    %1932 = vmatprep.subr.mxu0 0.0
    %1933 = vmatpush1.msra.mxu0 0.0
    %1934 = vmatprep.subr.mxu0 0.0
    %1935 = vmatpush1.msra.mxu0 0.0
    %1936 = vmatprep.subr.mxu0 0.0
    %1937 = vmatpush1.msra.mxu0 0.0
    %1938 = vmatprep.subr.mxu0 0.0
    %1939 = vmatpush1.msra.mxu0 0.0
    %1940 = vmatprep.subr.mxu0 0.0
    %1941 = vmatpush1.msra.mxu0 0.0
    %1942 = vmatprep.subr.mxu0 0.0
    %1943 = vmatpush1.msra.mxu0 0.0
    %1944 = vmatprep.subr.mxu0 0.0
    %1945 = vmatpush1.msra.mxu0 0.0
    %1946 = vmatprep.mubr.f32.mxu0 0.0
    %1947 = vmatmul.mubr.f32.gmra.mrb[0].mxu0 %v1880
    %v1948 = vpop.f32.mrb[0].mxu0
    %v1949 = vadd.f32 %v1876, %v1948
    %v1950 = vpop.f32.mrb[0].mxu0
    %1951 = vdwg.mxu0
    %vm1952 = vcmask 74752
    %v1953 = vsel %vm1952, %v1949, -inf
    %1954 = vmax.xlane.f32.xlu0 %v1953
    %v1955 = vpop.xlane.xlu0 %1954
    %v1956 = vsub.f32 %v1949, %v1955
    %v1957 = vmul.f32 %v1956, 1.442695
    %v1958 = vpow.pop %v1957
    %v1959 = vsel %vm1952, %v1958, 0.0
    %1960 = vadd.xlane.f32.xlu0 %v1959
    %v1961 = vpop.xlane.xlu0 %1960
    %v1962 = vlog2.pop %v1961
    %v1963 = vmul.f32 %v1962, 0.6931472
    %v1964 = vsub.f32 %v1956, %v1963
    %1965 = vst.msk [vmem:[#allocation7] sm:$0x3] %vm1952, %v1964
    // Predicated region
    $region42: #{cnn_fashion_forward.1} parent=1 // pred_check
      _
    $region43: #{cnn_fashion_forward.1} parent=1 // pred_check_branch
      %1967 = sbr.rel (0) target = $region45
    $region44: #{cnn_fashion_forward.1} parent=1 // pred_region
      %s1969 = ssub.s32 32, 32
      %1970 = vsyncadd [#allocation6], %s1969
      %s1972 = sshll.u32 [#allocation7], 4
      %s1973 = int_to_ptr.vmem [resolvable:$true] %s1972
      %1975 = dma.vmem_to_hbm [thread:$0]  %s1973, 32, %s9, [#allocation6]
    $region45: #{cnn_fashion_forward.1} parent=1 // pred_fallthru
      _
    // Predicated region
    $region46: #{cnn_fashion_forward.1} parent=1 // pred_check
      _
    $region47: #{cnn_fashion_forward.1} parent=1 // pred_check_branch
      %1977 = sbr.rel (0) target = $region49
    $region48: #{cnn_fashion_forward.1} parent=1 // pred_region
      %1978 = dma.done [#allocation6], 32
    $region49: #{cnn_fashion_forward.1} parent=1 // pred_fallthru
      _
    %1979 = vsyncpa [#allocation5], 1
    %1980 = vsyncpa [#allocation6], 1

</llo_original>
